<compile_context>
chip_gen: v5e
topology: v5e:2x2
jax: 0.10.0
libtpu: 0.0.40
codegen_flags: <defaults>
</compile_context>

<pallas_src>
import functools

import jax
import jax.numpy as jnp
from jax import lax
from jax.experimental import pallas as pl
from jax.experimental.pallas import tpu as pltpu

LN_EPS = 1e-5  # torch.nn.LayerNorm default


def _layernorm(x, gamma, beta):
    mean = jnp.mean(x, axis=-1, keepdims=True)
    var = jnp.mean((x - mean) ** 2, axis=-1, keepdims=True)  # biased, like torch LN
    return (x - mean) * lax.rsqrt(var + LN_EPS) * gamma + beta


def _gelu_exact(x):
    # torch nn.GELU() default (erf form)
    return 0.5 * x * (1.0 + lax.erf(x * (2.0 ** -0.5)))


def sharp_block_kernel(
    x_ref,
    g1_ref, b1_ref,
    wq_ref, wk_ref, wv_ref,
    wproj_ref, bproj_ref,
    g2_ref, b2_ref,
    wfc1_ref, bfc1_ref,
    wfc2_ref, bfc2_ref,
    out_ref, v0_ref,
    *, num_heads, head_dim, matmul_dtype,
):
    f32 = jnp.float32
    x = x_ref[0].astype(f32)                     # (N, C)
    N = x.shape[0]
    C = num_heads * head_dim

    # ---- norm1 (f32) -> q / k / v projections (MXU, matmul_dtype operands) ----
    h1 = _layernorm(x, g1_ref[...].astype(f32), b1_ref[...].astype(f32))
    h1m = h1.astype(matmul_dtype)
    # attention scale is already folded into w_q (wrapper side)
    q_all = jnp.dot(h1m, wq_ref[...], preferred_element_type=f32)   # (N, C)
    k_all = jnp.dot(h1m, wk_ref[...], preferred_element_type=f32)   # (N, C)
    v_all = jnp.dot(h1m, wv_ref[...], preferred_element_type=f32)   # (N, C)

    # lane-dense v0 output (full-C store); reshaped to (B, H, N, hd) in wrapper
    v0_ref[0] = v_all.astype(v0_ref.dtype)

    # ---- per-head twicing attention, output projection folded in ----
    # attn_proj = sum_h (AV_h + A_h @ (V_h - AV_h)) @ Wproj[h*hd:(h+1)*hd, :]
    acc = jnp.zeros((N, C), f32)
    for h in range(num_heads):
        lo = h * head_dim
        q = q_all[:, lo:lo + head_dim].astype(matmul_dtype)
        k = k_all[:, lo:lo + head_dim].astype(matmul_dtype)
        v = v_all[:, lo:lo + head_dim]                               # f32

        # q @ k^T without an explicit k transpose (contract dim 1 with dim 1)
        s = lax.dot_general(q, k, (((1,), (1,)), ((), ())),
                            preferred_element_type=f32)             # (N, N)
        m = jnp.max(s, axis=-1, keepdims=True)
        p = jnp.exp(s - m)                                          # unnormalized
        l = jnp.sum(p, axis=-1, keepdims=True)
        inv_l = pl.reciprocal(l, approx=False)                      # (N, 1)

        pm = p.astype(matmul_dtype)
        av = jnp.dot(pm, v.astype(matmul_dtype),
                     preferred_element_type=f32) * inv_l            # A @ V
        res = v - av
        o_h = av + jnp.dot(pm, res.astype(matmul_dtype),
                           preferred_element_type=f32) * inv_l      # AV + A @ res

        acc = acc + jnp.dot(o_h.astype(matmul_dtype),
                            wproj_ref[lo:lo + head_dim, :],
                            preferred_element_type=f32)             # (N, C)

    # ---- proj bias + first residual ----
    x1 = x + acc + bproj_ref[...].astype(f32)

    # ---- norm2 + MLP (exact GELU) + second residual ----
    h2 = _layernorm(x1, g2_ref[...].astype(f32), b2_ref[...].astype(f32))
    hid = jnp.dot(h2.astype(matmul_dtype), wfc1_ref[...],
                  preferred_element_type=f32) + bfc1_ref[...].astype(f32)
    hid = _gelu_exact(hid)
    mlp = jnp.dot(hid.astype(matmul_dtype), wfc2_ref[...],
                  preferred_element_type=f32) + bfc2_ref[...].astype(f32)

    out_ref[0] = (x1 + mlp).astype(out_ref.dtype)


def _vmem_limit_bytes(N, C, Hm, matmul_dtype):
    wsz = jnp.dtype(matmul_dtype).itemsize
    weights = (4 * C * C + 2 * C * Hm) * wsz * 2      # pipeline double-buffers inputs
    io = 3 * N * C * 4 * 2                            # x / out / v0 blocks, double-buffered
    acts = (8 * N * C + 4 * N * N + 2 * N * Hm) * 4   # rough live f32 intermediates
    est = int(1.25 * (weights + io + acts)) + (2 << 20)
    return max(32 << 20, min(est, 64 << 20))          # stay within v7x physical VMEM


def sharp_block(x, params, num_heads, *, matmul_dtype=jnp.bfloat16):
    B, N, C = x.shape
    head_dim = C // num_heads
    Hm = params["w_fc1"].shape[1]
    scale = head_dim ** -0.5

    # Pre-split the fused qkv weight, fold the attention scale into w_q, and
    # cast the big matmul weights to the MXU operand dtype.  Biases / LN
    # parameters stay f32 (elementwise math is f32 on all generations).
    w_qkv = params["w_qkv"]
    w_q = (w_qkv[:, :C] * scale).astype(matmul_dtype)
    w_k = w_qkv[:, C:2 * C].astype(matmul_dtype)
    w_v = w_qkv[:, 2 * C:3 * C].astype(matmul_dtype)
    w_proj = params["w_proj"].astype(matmul_dtype)
    w_fc1 = params["w_fc1"].astype(matmul_dtype)
    w_fc2 = params["w_fc2"].astype(matmul_dtype)

    kernel = functools.partial(
        sharp_block_kernel, num_heads=num_heads, head_dim=head_dim,
        matmul_dtype=matmul_dtype)

    rep2 = lambda b: (0, 0)  # weights / biases: same (whole) block every step

    grid_spec = pltpu.PrefetchScalarGridSpec(
        num_scalar_prefetch=0,
        grid=(B,),
        in_specs=[
            pl.BlockSpec((1, N, C), lambda b: (b, 0, 0)),     # x
            pl.BlockSpec((1, C), rep2),                       # gamma1
            pl.BlockSpec((1, C), rep2),                       # beta1
            pl.BlockSpec((C, C), rep2),                       # w_q (scale folded)
            pl.BlockSpec((C, C), rep2),                       # w_k
            pl.BlockSpec((C, C), rep2),                       # w_v
            pl.BlockSpec((C, C), rep2),                       # w_proj
            pl.BlockSpec((1, C), rep2),                       # b_proj
            pl.BlockSpec((1, C), rep2),                       # gamma2
            pl.BlockSpec((1, C), rep2),                       # beta2
            pl.BlockSpec((C, Hm), rep2),                      # w_fc1
            pl.BlockSpec((1, Hm), rep2),                      # b_fc1
            pl.BlockSpec((Hm, C), rep2),                      # w_fc2
            pl.BlockSpec((1, C), rep2),                       # b_fc2
        ],
        out_specs=[
            pl.BlockSpec((1, N, C), lambda b: (b, 0, 0)),     # block output
            pl.BlockSpec((1, N, C), lambda b: (b, 0, 0)),     # v0 lane-dense slab
        ],
    )

    out, v0_slab = pl.pallas_call(
        kernel,
        grid_spec=grid_spec,
        out_shape=(
            jax.ShapeDtypeStruct((B, N, C), x.dtype),
            jax.ShapeDtypeStruct((B, N, C), x.dtype),
        ),
        compiler_params=pltpu.CompilerParams(
            dimension_semantics=("parallel",),
            vmem_limit_bytes=_vmem_limit_bytes(N, C, Hm, matmul_dtype)),
    )(
        x,
        params["gamma1"], params["beta1"],
        w_q, w_k, w_v,
        w_proj, params["b_proj"],
        params["gamma2"], params["beta2"],
        w_fc1, params["b_fc1"],
        w_fc2, params["b_fc2"],
    )

    # (B, N, C) -> (B, num_heads, N, head_dim), matching PyTorch's head_v
    v0 = v0_slab.reshape(B, N, num_heads, head_dim).transpose(0, 2, 1, 3)
    xv_diff = None  # pure pass-through in the PyTorch module
    return out, v0, xv_diff


def sharp_block_reference(x, params, num_heads):
    """Pure-JAX f32 reference mirroring the PyTorch forward."""
    B, N, C = x.shape
    hd = C // num_heads
    scale = hd ** -0.5

    def ln(v, g, b):
        m = jnp.mean(v, axis=-1, keepdims=True)
        var = jnp.mean((v - m) ** 2, axis=-1, keepdims=True)
        return (v - m) * lax.rsqrt(var + LN_EPS) * g + b

    h1 = ln(x, params["gamma1"][0], params["beta1"][0])
    qkv = h1 @ params["w_qkv"]                                    # (B, N, 3C)
    qkv = qkv.reshape(B, N, 3, num_heads, hd).transpose(2, 0, 3, 1, 4)
    q, k, v = qkv[0], qkv[1], qkv[2]                              # (B, H, N, hd)
    s = jnp.einsum("bhnd,bhmd->bhnm", q, k) * scale
    A = jax.nn.softmax(s, axis=-1)
    AV = jnp.einsum("bhnm,bhmd->bhnd", A, v)
    res = v - AV
    o = AV + jnp.einsum("bhnm,bhmd->bhnd", A, res)
    o = o.transpose(0, 2, 1, 3).reshape(B, N, C)
    o = o @ params["w_proj"] + params["b_proj"][0]
    x1 = x + o
    h2 = ln(x1, params["gamma2"][0], params["beta2"][0])
    hid = jax.nn.gelu(h2 @ params["w_fc1"] + params["b_fc1"][0], approximate=False)
    mlp = hid @ params["w_fc2"] + params["b_fc2"][0]
    return x1 + mlp, v


def init_params(key, dim, mlp_ratio=4.0):
    H = int(dim * mlp_ratio)
    ks = jax.random.split(key, 6)
    s = 0.02
    return {
        "gamma1": jnp.ones((1, dim), jnp.float32),
        "beta1": jnp.zeros((1, dim), jnp.float32),
        "w_qkv": s * jax.random.normal(ks[0], (dim, 3 * dim), jnp.float32),
        "w_proj": s * jax.random.normal(ks[1], (dim, dim), jnp.float32),
        "b_proj": s * jax.random.normal(ks[2], (1, dim), jnp.float32),
        "gamma2": jnp.ones((1, dim), jnp.float32),
        "beta2": jnp.zeros((1, dim), jnp.float32),
        "w_fc1": s * jax.random.normal(ks[3], (dim, H), jnp.float32),
        "b_fc1": s * jax.random.normal(ks[4], (1, H), jnp.float32),
        "w_fc2": s * jax.random.normal(ks[5], (H, dim), jnp.float32),
        "b_fc2": jnp.zeros((1, dim), jnp.float32),
    }


if __name__ == "__main__":
    B, N, C = 2, 8, 32
    NUM_HEADS = 4

    key = jax.random.PRNGKey(0)
    kx, kp = jax.random.split(key)
    x = jax.random.normal(kx, (B, N, C), jnp.float32)
    params = init_params(kp, C)

    ref_out, ref_v0 = sharp_block_reference(x, params, NUM_HEADS)

    # Exact path (f32 MXU operands): tight tolerance vs the PyTorch-mirroring ref.
    out32, v032, _ = sharp_block(x, params, NUM_HEADS, matmul_dtype=jnp.float32)
    out32 = jax.block_until_ready(out32)
    v032 = jax.block_until_ready(v032)
    assert jnp.allclose(out32, ref_out, atol=1e-4, rtol=1e-4), "f32 output mismatch"
    assert jnp.allclose(v032, ref_v0, atol=1e-4, rtol=1e-4), "f32 v0 mismatch"

    # Performance path (bf16 MXU operands, f32 accumulation / elementwise).
    out, v0, xv_diff = sharp_block(x, params, NUM_HEADS)  # bf16 default
    out = jax.block_until_ready(out)
    v0 = jax.block_until_ready(v0)
    assert jnp.allclose(out, ref_out, atol=2e-2, rtol=2e-2), "bf16 output mismatch"
    assert jnp.allclose(v0, ref_v0, atol=2e-2, rtol=2e-2), "bf16 v0 mismatch"

    print("KERNEL_OK")
</pallas_src>

<mosaic_0001>
module attributes {stable_mosaic.version = 11 : i64} {
  func.func @sharp_block_kernel(%arg0: i32, %arg1: memref<1x8x32xf32, #tpu.memory_space<vmem>>, %arg2: memref<1x32xf32, #tpu.memory_space<vmem>>, %arg3: memref<1x32xf32, #tpu.memory_space<vmem>>, %arg4: memref<32x32xf32, #tpu.memory_space<vmem>>, %arg5: memref<32x32xf32, #tpu.memory_space<vmem>>, %arg6: memref<32x32xf32, #tpu.memory_space<vmem>>, %arg7: memref<32x32xf32, #tpu.memory_space<vmem>>, %arg8: memref<1x32xf32, #tpu.memory_space<vmem>>, %arg9: memref<1x32xf32, #tpu.memory_space<vmem>>, %arg10: memref<1x32xf32, #tpu.memory_space<vmem>>, %arg11: memref<32x128xf32, #tpu.memory_space<vmem>>, %arg12: memref<1x128xf32, #tpu.memory_space<vmem>>, %arg13: memref<128x32xf32, #tpu.memory_space<vmem>>, %arg14: memref<1x32xf32, #tpu.memory_space<vmem>>, %arg15: memref<1x8x32xf32, #tpu.memory_space<vmem>>, %arg16: memref<1x8x32xf32, #tpu.memory_space<vmem>>) attributes {dimension_semantics = [#tpu.dimension_semantics<parallel>], iteration_bounds = array<i64: 2>, scalar_prefetch = 0 : i64, scratch_operands = 0 : i64, tpu.core_type = #tpu.core_type<tc>, window_params = [{transform_indices = @transform_0, window_bounds = array<i64: 1, 8, 32>}, {pipeline_mode = #tpu.pipeline_mode<synchronous>, transform_indices = @transform_1, window_bounds = array<i64: 1, 32>}, {pipeline_mode = #tpu.pipeline_mode<synchronous>, transform_indices = @transform_2, window_bounds = array<i64: 1, 32>}, {pipeline_mode = #tpu.pipeline_mode<synchronous>, transform_indices = @transform_3, window_bounds = array<i64: 32, 32>}, {pipeline_mode = #tpu.pipeline_mode<synchronous>, transform_indices = @transform_4, window_bounds = array<i64: 32, 32>}, {pipeline_mode = #tpu.pipeline_mode<synchronous>, transform_indices = @transform_5, window_bounds = array<i64: 32, 32>}, {pipeline_mode = #tpu.pipeline_mode<synchronous>, transform_indices = @transform_6, window_bounds = array<i64: 32, 32>}, {pipeline_mode = #tpu.pipeline_mode<synchronous>, transform_indices = @transform_7, window_bounds = array<i64: 1, 32>}, {pipeline_mode = #tpu.pipeline_mode<synchronous>, transform_indices = @transform_8, window_bounds = array<i64: 1, 32>}, {pipeline_mode = #tpu.pipeline_mode<synchronous>, transform_indices = @transform_9, window_bounds = array<i64: 1, 32>}, {pipeline_mode = #tpu.pipeline_mode<synchronous>, transform_indices = @transform_10, window_bounds = array<i64: 32, 128>}, {pipeline_mode = #tpu.pipeline_mode<synchronous>, transform_indices = @transform_11, window_bounds = array<i64: 1, 128>}, {pipeline_mode = #tpu.pipeline_mode<synchronous>, transform_indices = @transform_12, window_bounds = array<i64: 128, 32>}, {pipeline_mode = #tpu.pipeline_mode<synchronous>, transform_indices = @transform_13, window_bounds = array<i64: 1, 32>}, {transform_indices = @transform_14, window_bounds = array<i64: 1, 8, 32>}, {transform_indices = @transform_15, window_bounds = array<i64: 1, 8, 32>}]} {
    %c0 = arith.constant 0 : index
    %c0_0 = arith.constant 0 : index
    %c0_1 = arith.constant 0 : index
    %0 = vector.load %arg1[%c0, %c0_0, %c0_1] : memref<1x8x32xf32, #tpu.memory_space<vmem>>, vector<1x8x32xf32>
    %1 = vector.shape_cast %0 : vector<1x8x32xf32> to vector<8x32xf32>
    %c0_2 = arith.constant 0 : index
    %c0_3 = arith.constant 0 : index
    %2 = vector.load %arg2[%c0_2, %c0_3] : memref<1x32xf32, #tpu.memory_space<vmem>>, vector<1x32xf32>
    %c0_4 = arith.constant 0 : index
    %c0_5 = arith.constant 0 : index
    %3 = vector.load %arg3[%c0_4, %c0_5] : memref<1x32xf32, #tpu.memory_space<vmem>>, vector<1x32xf32>
    %cst = arith.constant dense<0.000000e+00> : vector<8xf32>
    %4 = vector.multi_reduction <add>, %1, %cst [1] : vector<8x32xf32> to vector<8xf32>
    %5 = vector.shape_cast %4 : vector<8xf32> to vector<8x1xf32>
    %cst_6 = arith.constant 3.200000e+01 : f32
    %6 = vector.broadcast %cst_6 : f32 to vector<8x1xf32>
    %7 = arith.divf %5, %6 : vector<8x1xf32>
    %8 = vector.broadcast %7 : vector<8x1xf32> to vector<8x32xf32>
    %9 = arith.subf %1, %8 : vector<8x32xf32>
    %10 = arith.mulf %9, %9 : vector<8x32xf32>
    %cst_7 = arith.constant dense<0.000000e+00> : vector<8xf32>
    %11 = vector.multi_reduction <add>, %10, %cst_7 [1] : vector<8x32xf32> to vector<8xf32>
    %12 = vector.shape_cast %11 : vector<8xf32> to vector<8x1xf32>
    %cst_8 = arith.constant 3.200000e+01 : f32
    %13 = vector.broadcast %cst_8 : f32 to vector<8x1xf32>
    %14 = arith.divf %12, %13 : vector<8x1xf32>
    %15 = vector.broadcast %7 : vector<8x1xf32> to vector<8x32xf32>
    %16 = arith.subf %1, %15 : vector<8x32xf32>
    %cst_9 = arith.constant 9.99999974E-6 : f32
    %17 = vector.broadcast %cst_9 : f32 to vector<8x1xf32>
    %18 = arith.addf %14, %17 : vector<8x1xf32>
    %19 = math.rsqrt %18 : vector<8x1xf32>
    %20 = vector.broadcast %19 : vector<8x1xf32> to vector<8x32xf32>
    %21 = arith.mulf %16, %20 : vector<8x32xf32>
    %22 = vector.broadcast %2 : vector<1x32xf32> to vector<8x32xf32>
    %23 = arith.mulf %21, %22 : vector<8x32xf32>
    %24 = vector.broadcast %3 : vector<1x32xf32> to vector<8x32xf32>
    %25 = arith.addf %23, %24 : vector<8x32xf32>
    %c0_10 = arith.constant 0 : index
    %c0_11 = arith.constant 0 : index
    %26 = vector.load %arg4[%c0_10, %c0_11] : memref<32x32xf32, #tpu.memory_space<vmem>>, vector<32x32xf32>
    %cst_12 = arith.constant dense<0.000000e+00> : vector<8x32xf32>
    %27 = tpu.matmul %25, %26, %cst_12 {dimension_numbers = #tpu.dot_dimension_numbers<[1], [0], [0], [1], [0, 0, 1, 1], [], []>} : vector<8x32xf32>, vector<32x32xf32>, vector<8x32xf32> -> vector<8x32xf32>
    %c0_13 = arith.constant 0 : index
    %c0_14 = arith.constant 0 : index
    %28 = vector.load %arg5[%c0_13, %c0_14] : memref<32x32xf32, #tpu.memory_space<vmem>>, vector<32x32xf32>
    %cst_15 = arith.constant dense<0.000000e+00> : vector<8x32xf32>
    %29 = tpu.matmul %25, %28, %cst_15 {dimension_numbers = #tpu.dot_dimension_numbers<[1], [0], [0], [1], [0, 0, 1, 1], [], []>} : vector<8x32xf32>, vector<32x32xf32>, vector<8x32xf32> -> vector<8x32xf32>
    %c0_16 = arith.constant 0 : index
    %c0_17 = arith.constant 0 : index
    %30 = vector.load %arg6[%c0_16, %c0_17] : memref<32x32xf32, #tpu.memory_space<vmem>>, vector<32x32xf32>
    %cst_18 = arith.constant dense<0.000000e+00> : vector<8x32xf32>
    %31 = tpu.matmul %25, %30, %cst_18 {dimension_numbers = #tpu.dot_dimension_numbers<[1], [0], [0], [1], [0, 0, 1, 1], [], []>} : vector<8x32xf32>, vector<32x32xf32>, vector<8x32xf32> -> vector<8x32xf32>
    %c0_19 = arith.constant 0 : index
    %c0_20 = arith.constant 0 : index
    %c0_21 = arith.constant 0 : index
    %32 = vector.load %arg16[%c0_19, %c0_20, %c0_21] : memref<1x8x32xf32, #tpu.memory_space<vmem>>, vector<1x8x32xf32>
    %33 = vector.shape_cast %32 : vector<1x8x32xf32> to vector<8x32xf32>
    %34 = vector.shape_cast %31 : vector<8x32xf32> to vector<1x8x32xf32>
    tpu.vector_store %arg16[%c0_19, %c0_20, %c0_21], %34 {strides = array<i32>} : memref<1x8x32xf32, #tpu.memory_space<vmem>>, vector<1x8x32xf32>,
    %cst_22 = arith.constant 0.000000e+00 : f32
    %35 = vector.broadcast %cst_22 : f32 to vector<8x32xf32>
    %36 = vector.extract_strided_slice %27 {offsets = [0, 0], sizes = [8, 8], strides = [1, 1]} : vector<8x32xf32> to vector<8x8xf32>
    %37 = vector.extract_strided_slice %29 {offsets = [0, 0], sizes = [8, 8], strides = [1, 1]} : vector<8x32xf32> to vector<8x8xf32>
    %38 = vector.extract_strided_slice %31 {offsets = [0, 0], sizes = [8, 8], strides = [1, 1]} : vector<8x32xf32> to vector<8x8xf32>
    %cst_23 = arith.constant dense<0.000000e+00> : vector<8x8xf32>
    %39 = tpu.matmul %36, %37, %cst_23 {dimension_numbers = #tpu.dot_dimension_numbers<[1], [1], [0], [0], [0, 0, 1, 0], [], []>} : vector<8x8xf32>, vector<8x8xf32>, vector<8x8xf32> -> vector<8x8xf32>
    %cst_24 = arith.constant dense<0xFF800000> : vector<8xf32>
    %40 = vector.multi_reduction <maximumf>, %39, %cst_24 [1] : vector<8x8xf32> to vector<8xf32>
    %41 = vector.shape_cast %40 : vector<8xf32> to vector<8x1xf32>
    %42 = vector.broadcast %41 : vector<8x1xf32> to vector<8x8xf32>
    %43 = arith.subf %39, %42 : vector<8x8xf32>
    %44 = math.exp %43 : vector<8x8xf32>
    %cst_25 = arith.constant dense<0.000000e+00> : vector<8xf32>
    %45 = vector.multi_reduction <add>, %44, %cst_25 [1] : vector<8x8xf32> to vector<8xf32>
    %46 = vector.shape_cast %45 : vector<8xf32> to vector<8x1xf32>
    %47 = tpu.reciprocal %46 : vector<8x1xf32> -> vector<8x1xf32>
    %cst_26 = arith.constant dense<0.000000e+00> : vector<8x8xf32>
    %48 = tpu.matmul %44, %38, %cst_26 {dimension_numbers = #tpu.dot_dimension_numbers<[1], [0], [0], [1], [0, 0, 1, 1], [], []>} : vector<8x8xf32>, vector<8x8xf32>, vector<8x8xf32> -> vector<8x8xf32>
    %49 = vector.broadcast %47 : vector<8x1xf32> to vector<8x8xf32>
    %50 = arith.mulf %48, %49 : vector<8x8xf32>
    %51 = arith.subf %38, %50 : vector<8x8xf32>
    %cst_27 = arith.constant dense<0.000000e+00> : vector<8x8xf32>
    %52 = tpu.matmul %44, %51, %cst_27 {dimension_numbers = #tpu.dot_dimension_numbers<[1], [0], [0], [1], [0, 0, 1, 1], [], []>} : vector<8x8xf32>, vector<8x8xf32>, vector<8x8xf32> -> vector<8x8xf32>
    %53 = vector.broadcast %47 : vector<8x1xf32> to vector<8x8xf32>
    %54 = arith.mulf %52, %53 : vector<8x8xf32>
    %55 = arith.addf %50, %54 : vector<8x8xf32>
    %c0_28 = arith.constant 0 : index
    %c0_29 = arith.constant 0 : index
    %56 = vector.load %arg7[%c0_28, %c0_29] : memref<32x32xf32, #tpu.memory_space<vmem>>, vector<8x32xf32>
    %cst_30 = arith.constant dense<0.000000e+00> : vector<8x32xf32>
    %57 = tpu.matmul %55, %56, %cst_30 {dimension_numbers = #tpu.dot_dimension_numbers<[1], [0], [0], [1], [0, 0, 1, 1], [], []>} : vector<8x8xf32>, vector<8x32xf32>, vector<8x32xf32> -> vector<8x32xf32>
    %58 = arith.addf %35, %57 : vector<8x32xf32>
    %59 = vector.extract_strided_slice %27 {offsets = [0, 8], sizes = [8, 8], strides = [1, 1]} : vector<8x32xf32> to vector<8x8xf32>
    %60 = vector.extract_strided_slice %29 {offsets = [0, 8], sizes = [8, 8], strides = [1, 1]} : vector<8x32xf32> to vector<8x8xf32>
    %61 = vector.extract_strided_slice %31 {offsets = [0, 8], sizes = [8, 8], strides = [1, 1]} : vector<8x32xf32> to vector<8x8xf32>
    %cst_31 = arith.constant dense<0.000000e+00> : vector<8x8xf32>
    %62 = tpu.matmul %59, %60, %cst_31 {dimension_numbers = #tpu.dot_dimension_numbers<[1], [1], [0], [0], [0, 0, 1, 0], [], []>} : vector<8x8xf32>, vector<8x8xf32>, vector<8x8xf32> -> vector<8x8xf32>
    %cst_32 = arith.constant dense<0xFF800000> : vector<8xf32>
    %63 = vector.multi_reduction <maximumf>, %62, %cst_32 [1] : vector<8x8xf32> to vector<8xf32>
    %64 = vector.shape_cast %63 : vector<8xf32> to vector<8x1xf32>
    %65 = vector.broadcast %64 : vector<8x1xf32> to vector<8x8xf32>
    %66 = arith.subf %62, %65 : vector<8x8xf32>
    %67 = math.exp %66 : vector<8x8xf32>
    %cst_33 = arith.constant dense<0.000000e+00> : vector<8xf32>
    %68 = vector.multi_reduction <add>, %67, %cst_33 [1] : vector<8x8xf32> to vector<8xf32>
    %69 = vector.shape_cast %68 : vector<8xf32> to vector<8x1xf32>
    %70 = tpu.reciprocal %69 : vector<8x1xf32> -> vector<8x1xf32>
    %cst_34 = arith.constant dense<0.000000e+00> : vector<8x8xf32>
    %71 = tpu.matmul %67, %61, %cst_34 {dimension_numbers = #tpu.dot_dimension_numbers<[1], [0], [0], [1], [0, 0, 1, 1], [], []>} : vector<8x8xf32>, vector<8x8xf32>, vector<8x8xf32> -> vector<8x8xf32>
    %72 = vector.broadcast %70 : vector<8x1xf32> to vector<8x8xf32>
    %73 = arith.mulf %71, %72 : vector<8x8xf32>
    %74 = arith.subf %61, %73 : vector<8x8xf32>
    %cst_35 = arith.constant dense<0.000000e+00> : vector<8x8xf32>
    %75 = tpu.matmul %67, %74, %cst_35 {dimension_numbers = #tpu.dot_dimension_numbers<[1], [0], [0], [1], [0, 0, 1, 1], [], []>} : vector<8x8xf32>, vector<8x8xf32>, vector<8x8xf32> -> vector<8x8xf32>
    %76 = vector.broadcast %70 : vector<8x1xf32> to vector<8x8xf32>
    %77 = arith.mulf %75, %76 : vector<8x8xf32>
    %78 = arith.addf %73, %77 : vector<8x8xf32>
    %c8 = arith.constant 8 : index
    %c0_36 = arith.constant 0 : index
    %79 = vector.load %arg7[%c8, %c0_36] : memref<32x32xf32, #tpu.memory_space<vmem>>, vector<8x32xf32>
    %cst_37 = arith.constant dense<0.000000e+00> : vector<8x32xf32>
    %80 = tpu.matmul %78, %79, %cst_37 {dimension_numbers = #tpu.dot_dimension_numbers<[1], [0], [0], [1], [0, 0, 1, 1], [], []>} : vector<8x8xf32>, vector<8x32xf32>, vector<8x32xf32> -> vector<8x32xf32>
    %81 = arith.addf %58, %80 : vector<8x32xf32>
    %82 = vector.extract_strided_slice %27 {offsets = [0, 16], sizes = [8, 8], strides = [1, 1]} : vector<8x32xf32> to vector<8x8xf32>
    %83 = vector.extract_strided_slice %29 {offsets = [0, 16], sizes = [8, 8], strides = [1, 1]} : vector<8x32xf32> to vector<8x8xf32>
    %84 = vector.extract_strided_slice %31 {offsets = [0, 16], sizes = [8, 8], strides = [1, 1]} : vector<8x32xf32> to vector<8x8xf32>
    %cst_38 = arith.constant dense<0.000000e+00> : vector<8x8xf32>
    %85 = tpu.matmul %82, %83, %cst_38 {dimension_numbers = #tpu.dot_dimension_numbers<[1], [1], [0], [0], [0, 0, 1, 0], [], []>} : vector<8x8xf32>, vector<8x8xf32>, vector<8x8xf32> -> vector<8x8xf32>
    %cst_39 = arith.constant dense<0xFF800000> : vector<8xf32>
    %86 = vector.multi_reduction <maximumf>, %85, %cst_39 [1] : vector<8x8xf32> to vector<8xf32>
    %87 = vector.shape_cast %86 : vector<8xf32> to vector<8x1xf32>
    %88 = vector.broadcast %87 : vector<8x1xf32> to vector<8x8xf32>
    %89 = arith.subf %85, %88 : vector<8x8xf32>
    %90 = math.exp %89 : vector<8x8xf32>
    %cst_40 = arith.constant dense<0.000000e+00> : vector<8xf32>
    %91 = vector.multi_reduction <add>, %90, %cst_40 [1] : vector<8x8xf32> to vector<8xf32>
    %92 = vector.shape_cast %91 : vector<8xf32> to vector<8x1xf32>
    %93 = tpu.reciprocal %92 : vector<8x1xf32> -> vector<8x1xf32>
    %cst_41 = arith.constant dense<0.000000e+00> : vector<8x8xf32>
    %94 = tpu.matmul %90, %84, %cst_41 {dimension_numbers = #tpu.dot_dimension_numbers<[1], [0], [0], [1], [0, 0, 1, 1], [], []>} : vector<8x8xf32>, vector<8x8xf32>, vector<8x8xf32> -> vector<8x8xf32>
    %95 = vector.broadcast %93 : vector<8x1xf32> to vector<8x8xf32>
    %96 = arith.mulf %94, %95 : vector<8x8xf32>
    %97 = arith.subf %84, %96 : vector<8x8xf32>
    %cst_42 = arith.constant dense<0.000000e+00> : vector<8x8xf32>
    %98 = tpu.matmul %90, %97, %cst_42 {dimension_numbers = #tpu.dot_dimension_numbers<[1], [0], [0], [1], [0, 0, 1, 1], [], []>} : vector<8x8xf32>, vector<8x8xf32>, vector<8x8xf32> -> vector<8x8xf32>
    %99 = vector.broadcast %93 : vector<8x1xf32> to vector<8x8xf32>
    %100 = arith.mulf %98, %99 : vector<8x8xf32>
    %101 = arith.addf %96, %100 : vector<8x8xf32>
    %c16 = arith.constant 16 : index
    %c0_43 = arith.constant 0 : index
    %102 = vector.load %arg7[%c16, %c0_43] : memref<32x32xf32, #tpu.memory_space<vmem>>, vector<8x32xf32>
    %cst_44 = arith.constant dense<0.000000e+00> : vector<8x32xf32>
    %103 = tpu.matmul %101, %102, %cst_44 {dimension_numbers = #tpu.dot_dimension_numbers<[1], [0], [0], [1], [0, 0, 1, 1], [], []>} : vector<8x8xf32>, vector<8x32xf32>, vector<8x32xf32> -> vector<8x32xf32>
    %104 = arith.addf %81, %103 : vector<8x32xf32>
    %105 = vector.extract_strided_slice %27 {offsets = [0, 24], sizes = [8, 8], strides = [1, 1]} : vector<8x32xf32> to vector<8x8xf32>
    %106 = vector.extract_strided_slice %29 {offsets = [0, 24], sizes = [8, 8], strides = [1, 1]} : vector<8x32xf32> to vector<8x8xf32>
    %107 = vector.extract_strided_slice %31 {offsets = [0, 24], sizes = [8, 8], strides = [1, 1]} : vector<8x32xf32> to vector<8x8xf32>
    %cst_45 = arith.constant dense<0.000000e+00> : vector<8x8xf32>
    %108 = tpu.matmul %105, %106, %cst_45 {dimension_numbers = #tpu.dot_dimension_numbers<[1], [1], [0], [0], [0, 0, 1, 0], [], []>} : vector<8x8xf32>, vector<8x8xf32>, vector<8x8xf32> -> vector<8x8xf32>
    %cst_46 = arith.constant dense<0xFF800000> : vector<8xf32>
    %109 = vector.multi_reduction <maximumf>, %108, %cst_46 [1] : vector<8x8xf32> to vector<8xf32>
    %110 = vector.shape_cast %109 : vector<8xf32> to vector<8x1xf32>
    %111 = vector.broadcast %110 : vector<8x1xf32> to vector<8x8xf32>
    %112 = arith.subf %108, %111 : vector<8x8xf32>
    %113 = math.exp %112 : vector<8x8xf32>
    %cst_47 = arith.constant dense<0.000000e+00> : vector<8xf32>
    %114 = vector.multi_reduction <add>, %113, %cst_47 [1] : vector<8x8xf32> to vector<8xf32>
    %115 = vector.shape_cast %114 : vector<8xf32> to vector<8x1xf32>
    %116 = tpu.reciprocal %115 : vector<8x1xf32> -> vector<8x1xf32>
    %cst_48 = arith.constant dense<0.000000e+00> : vector<8x8xf32>
    %117 = tpu.matmul %113, %107, %cst_48 {dimension_numbers = #tpu.dot_dimension_numbers<[1], [0], [0], [1], [0, 0, 1, 1], [], []>} : vector<8x8xf32>, vector<8x8xf32>, vector<8x8xf32> -> vector<8x8xf32>
    %118 = vector.broadcast %116 : vector<8x1xf32> to vector<8x8xf32>
    %119 = arith.mulf %117, %118 : vector<8x8xf32>
    %120 = arith.subf %107, %119 : vector<8x8xf32>
    %cst_49 = arith.constant dense<0.000000e+00> : vector<8x8xf32>
    %121 = tpu.matmul %113, %120, %cst_49 {dimension_numbers = #tpu.dot_dimension_numbers<[1], [0], [0], [1], [0, 0, 1, 1], [], []>} : vector<8x8xf32>, vector<8x8xf32>, vector<8x8xf32> -> vector<8x8xf32>
    %122 = vector.broadcast %116 : vector<8x1xf32> to vector<8x8xf32>
    %123 = arith.mulf %121, %122 : vector<8x8xf32>
    %124 = arith.addf %119, %123 : vector<8x8xf32>
    %c24 = arith.constant 24 : index
    %c0_50 = arith.constant 0 : index
    %125 = vector.load %arg7[%c24, %c0_50] : memref<32x32xf32, #tpu.memory_space<vmem>>, vector<8x32xf32>
    %cst_51 = arith.constant dense<0.000000e+00> : vector<8x32xf32>
    %126 = tpu.matmul %124, %125, %cst_51 {dimension_numbers = #tpu.dot_dimension_numbers<[1], [0], [0], [1], [0, 0, 1, 1], [], []>} : vector<8x8xf32>, vector<8x32xf32>, vector<8x32xf32> -> vector<8x32xf32>
    %127 = arith.addf %104, %126 : vector<8x32xf32>
    %128 = arith.addf %1, %127 : vector<8x32xf32>
    %c0_52 = arith.constant 0 : index
    %c0_53 = arith.constant 0 : index
    %129 = vector.load %arg8[%c0_52, %c0_53] : memref<1x32xf32, #tpu.memory_space<vmem>>, vector<1x32xf32>
    %130 = vector.broadcast %129 : vector<1x32xf32> to vector<8x32xf32>
    %131 = arith.addf %128, %130 : vector<8x32xf32>
    %c0_54 = arith.constant 0 : index
    %c0_55 = arith.constant 0 : index
    %132 = vector.load %arg9[%c0_54, %c0_55] : memref<1x32xf32, #tpu.memory_space<vmem>>, vector<1x32xf32>
    %c0_56 = arith.constant 0 : index
    %c0_57 = arith.constant 0 : index
    %133 = vector.load %arg10[%c0_56, %c0_57] : memref<1x32xf32, #tpu.memory_space<vmem>>, vector<1x32xf32>
    %cst_58 = arith.constant dense<0.000000e+00> : vector<8xf32>
    %134 = vector.multi_reduction <add>, %131, %cst_58 [1] : vector<8x32xf32> to vector<8xf32>
    %135 = vector.shape_cast %134 : vector<8xf32> to vector<8x1xf32>
    %cst_59 = arith.constant 3.200000e+01 : f32
    %136 = vector.broadcast %cst_59 : f32 to vector<8x1xf32>
    %137 = arith.divf %135, %136 : vector<8x1xf32>
    %138 = vector.broadcast %137 : vector<8x1xf32> to vector<8x32xf32>
    %139 = arith.subf %131, %138 : vector<8x32xf32>
    %140 = arith.mulf %139, %139 : vector<8x32xf32>
    %cst_60 = arith.constant dense<0.000000e+00> : vector<8xf32>
    %141 = vector.multi_reduction <add>, %140, %cst_60 [1] : vector<8x32xf32> to vector<8xf32>
    %142 = vector.shape_cast %141 : vector<8xf32> to vector<8x1xf32>
    %cst_61 = arith.constant 3.200000e+01 : f32
    %143 = vector.broadcast %cst_61 : f32 to vector<8x1xf32>
    %144 = arith.divf %142, %143 : vector<8x1xf32>
    %145 = vector.broadcast %137 : vector<8x1xf32> to vector<8x32xf32>
    %146 = arith.subf %131, %145 : vector<8x32xf32>
    %cst_62 = arith.constant 9.99999974E-6 : f32
    %147 = vector.broadcast %cst_62 : f32 to vector<8x1xf32>
    %148 = arith.addf %144, %147 : vector<8x1xf32>
    %149 = math.rsqrt %148 : vector<8x1xf32>
    %150 = vector.broadcast %149 : vector<8x1xf32> to vector<8x32xf32>
    %151 = arith.mulf %146, %150 : vector<8x32xf32>
    %152 = vector.broadcast %132 : vector<1x32xf32> to vector<8x32xf32>
    %153 = arith.mulf %151, %152 : vector<8x32xf32>
    %154 = vector.broadcast %133 : vector<1x32xf32> to vector<8x32xf32>
    %155 = arith.addf %153, %154 : vector<8x32xf32>
    %c0_63 = arith.constant 0 : index
    %c0_64 = arith.constant 0 : index
    %156 = vector.load %arg11[%c0_63, %c0_64] : memref<32x128xf32, #tpu.memory_space<vmem>>, vector<32x128xf32>
    %cst_65 = arith.constant dense<0.000000e+00> : vector<8x128xf32>
    %157 = tpu.matmul %155, %156, %cst_65 {dimension_numbers = #tpu.dot_dimension_numbers<[1], [0], [0], [1], [0, 0, 1, 1], [], []>} : vector<8x32xf32>, vector<32x128xf32>, vector<8x128xf32> -> vector<8x128xf32>
    %c0_66 = arith.constant 0 : index
    %c0_67 = arith.constant 0 : index
    %158 = vector.load %arg12[%c0_66, %c0_67] : memref<1x128xf32, #tpu.memory_space<vmem>>, vector<1x128xf32>
    %159 = vector.broadcast %158 : vector<1x128xf32> to vector<8x128xf32>
    %160 = arith.addf %157, %159 : vector<8x128xf32>
    %cst_68 = arith.constant 5.000000e-01 : f32
    %161 = vector.broadcast %cst_68 : f32 to vector<8x128xf32>
    %162 = arith.mulf %161, %160 : vector<8x128xf32>
    %cst_69 = arith.constant 0.707106769 : f32
    %163 = vector.broadcast %cst_69 : f32 to vector<8x128xf32>
    %164 = arith.mulf %160, %163 : vector<8x128xf32>
    %165 = math.erf %164 : vector<8x128xf32>
    %cst_70 = arith.constant 1.000000e+00 : f32
    %166 = vector.broadcast %cst_70 : f32 to vector<8x128xf32>
    %167 = arith.addf %166, %165 : vector<8x128xf32>
    %168 = arith.mulf %162, %167 : vector<8x128xf32>
    %c0_71 = arith.constant 0 : index
    %c0_72 = arith.constant 0 : index
    %169 = vector.load %arg13[%c0_71, %c0_72] : memref<128x32xf32, #tpu.memory_space<vmem>>, vector<128x32xf32>
    %cst_73 = arith.constant dense<0.000000e+00> : vector<8x32xf32>
    %170 = tpu.matmul %168, %169, %cst_73 {dimension_numbers = #tpu.dot_dimension_numbers<[1], [0], [0], [1], [0, 0, 1, 1], [], []>} : vector<8x128xf32>, vector<128x32xf32>, vector<8x32xf32> -> vector<8x32xf32>
    %c0_74 = arith.constant 0 : index
    %c0_75 = arith.constant 0 : index
    %171 = vector.load %arg14[%c0_74, %c0_75] : memref<1x32xf32, #tpu.memory_space<vmem>>, vector<1x32xf32>
    %172 = vector.broadcast %171 : vector<1x32xf32> to vector<8x32xf32>
    %173 = arith.addf %170, %172 : vector<8x32xf32>
    %174 = arith.addf %131, %173 : vector<8x32xf32>
    %c0_76 = arith.constant 0 : index
    %c0_77 = arith.constant 0 : index
    %c0_78 = arith.constant 0 : index
    %175 = vector.load %arg15[%c0_76, %c0_77, %c0_78] : memref<1x8x32xf32, #tpu.memory_space<vmem>>, vector<1x8x32xf32>
    %176 = vector.shape_cast %175 : vector<1x8x32xf32> to vector<8x32xf32>
    %177 = vector.shape_cast %174 : vector<8x32xf32> to vector<1x8x32xf32>
    tpu.vector_store %arg15[%c0_76, %c0_77, %c0_78], %177 {strides = array<i32>} : memref<1x8x32xf32, #tpu.memory_space<vmem>>, vector<1x8x32xf32>,
    return
  }
  func.func @transform_0(%arg0: i32) -> (i32, i32, i32) {
    %c0_i32 = arith.constant 0 : i32
    %c0_i32_0 = arith.constant 0 : i32
    %c0_i32_1 = arith.constant 0 : i32
    return %arg0, %c0_i32, %c0_i32_0 : i32, i32, i32
  }
  func.func @transform_1(%arg0: i32) -> (i32, i32) {
    %c0_i32 = arith.constant 0 : i32
    %c0_i32_0 = arith.constant 0 : i32
    %c0_i32_1 = arith.constant 0 : i32
    return %c0_i32, %c0_i32_0 : i32, i32
  }
  func.func @transform_2(%arg0: i32) -> (i32, i32) {
    %c0_i32 = arith.constant 0 : i32
    %c0_i32_0 = arith.constant 0 : i32
    %c0_i32_1 = arith.constant 0 : i32
    return %c0_i32, %c0_i32_0 : i32, i32
  }
  func.func @transform_3(%arg0: i32) -> (i32, i32) {
    %c0_i32 = arith.constant 0 : i32
    %c0_i32_0 = arith.constant 0 : i32
    %c0_i32_1 = arith.constant 0 : i32
    return %c0_i32, %c0_i32_0 : i32, i32
  }
  func.func @transform_4(%arg0: i32) -> (i32, i32) {
    %c0_i32 = arith.constant 0 : i32
    %c0_i32_0 = arith.constant 0 : i32
    %c0_i32_1 = arith.constant 0 : i32
    return %c0_i32, %c0_i32_0 : i32, i32
  }
  func.func @transform_5(%arg0: i32) -> (i32, i32) {
    %c0_i32 = arith.constant 0 : i32
    %c0_i32_0 = arith.constant 0 : i32
    %c0_i32_1 = arith.constant 0 : i32
    return %c0_i32, %c0_i32_0 : i32, i32
  }
  func.func @transform_6(%arg0: i32) -> (i32, i32) {
    %c0_i32 = arith.constant 0 : i32
    %c0_i32_0 = arith.constant 0 : i32
    %c0_i32_1 = arith.constant 0 : i32
    return %c0_i32, %c0_i32_0 : i32, i32
  }
  func.func @transform_7(%arg0: i32) -> (i32, i32) {
    %c0_i32 = arith.constant 0 : i32
    %c0_i32_0 = arith.constant 0 : i32
    %c0_i32_1 = arith.constant 0 : i32
    return %c0_i32, %c0_i32_0 : i32, i32
  }
  func.func @transform_8(%arg0: i32) -> (i32, i32) {
    %c0_i32 = arith.constant 0 : i32
    %c0_i32_0 = arith.constant 0 : i32
    %c0_i32_1 = arith.constant 0 : i32
    return %c0_i32, %c0_i32_0 : i32, i32
  }
  func.func @transform_9(%arg0: i32) -> (i32, i32) {
    %c0_i32 = arith.constant 0 : i32
    %c0_i32_0 = arith.constant 0 : i32
    %c0_i32_1 = arith.constant 0 : i32
    return %c0_i32, %c0_i32_0 : i32, i32
  }
  func.func @transform_10(%arg0: i32) -> (i32, i32) {
    %c0_i32 = arith.constant 0 : i32
    %c0_i32_0 = arith.constant 0 : i32
    %c0_i32_1 = arith.constant 0 : i32
    return %c0_i32, %c0_i32_0 : i32, i32
  }
  func.func @transform_11(%arg0: i32) -> (i32, i32) {
    %c0_i32 = arith.constant 0 : i32
    %c0_i32_0 = arith.constant 0 : i32
    %c0_i32_1 = arith.constant 0 : i32
    return %c0_i32, %c0_i32_0 : i32, i32
  }
  func.func @transform_12(%arg0: i32) -> (i32, i32) {
    %c0_i32 = arith.constant 0 : i32
    %c0_i32_0 = arith.constant 0 : i32
    %c0_i32_1 = arith.constant 0 : i32
    return %c0_i32, %c0_i32_0 : i32, i32
  }
  func.func @transform_13(%arg0: i32) -> (i32, i32) {
    %c0_i32 = arith.constant 0 : i32
    %c0_i32_0 = arith.constant 0 : i32
    %c0_i32_1 = arith.constant 0 : i32
    return %c0_i32, %c0_i32_0 : i32, i32
  }
  func.func @transform_14(%arg0: i32) -> (i32, i32, i32) {
    %c0_i32 = arith.constant 0 : i32
    %c0_i32_0 = arith.constant 0 : i32
    %c0_i32_1 = arith.constant 0 : i32
    return %arg0, %c0_i32, %c0_i32_0 : i32, i32, i32
  }
  func.func @transform_15(%arg0: i32) -> (i32, i32, i32) {
    %c0_i32 = arith.constant 0 : i32
    %c0_i32_0 = arith.constant 0 : i32
    %c0_i32_1 = arith.constant 0 : i32
    return %arg0, %c0_i32, %c0_i32_0 : i32, i32, i32
  }
}

</mosaic_0001>

<llo_original>
// kernel: tpu_custom_call.1
$region0: #{tpu_custom_call.1}
  #allocation0 [shape = 'u32[]', space=smem, size = 0x4, offset = 0x4, fixed_abs, tag = 'smem constant byte address 0x4 - core index']
  #allocation1 [shape = 'u32[72,128]{1,0:T(1,128)}', space=vmem, size = 0x9000, scoped, tag = 'internal scratch']
  %s0 = inlined_call_operand.hbm [shape: f32[2,8,32], index: 0, kind: input, shape index: {}]
  %s1 = inlined_call_operand.hbm [shape: f32[1,32], index: 1, kind: input, shape index: {}]
  %s2 = inlined_call_operand.vmem [shape: f32[1,32], index: 2, kind: input, shape index: {}]
  %s3 = inlined_call_operand.vmem [shape: f32[32,32], index: 3, kind: input, shape index: {}]
  %s4 = inlined_call_operand.vmem [shape: f32[32,32], index: 4, kind: input, shape index: {}]
  %s5 = inlined_call_operand.vmem [shape: f32[32,32], index: 5, kind: input, shape index: {}]
  %s6 = inlined_call_operand.vmem [shape: f32[32,32], index: 6, kind: input, shape index: {}]
  %s7 = inlined_call_operand.vmem [shape: f32[1,32], index: 7, kind: input, shape index: {}]
  %s8 = inlined_call_operand.vmem [shape: f32[1,32], index: 8, kind: input, shape index: {}]
  %s9 = inlined_call_operand.vmem [shape: f32[1,32], index: 9, kind: input, shape index: {}]
  %s10 = inlined_call_operand.vmem [shape: f32[32,128], index: 10, kind: input, shape index: {}]
  %s11 = inlined_call_operand.vmem [shape: f32[1,128], index: 11, kind: input, shape index: {}]
  %s12 = inlined_call_operand.vmem [shape: f32[128,32], index: 12, kind: input, shape index: {}]
  %s13 = inlined_call_operand.vmem [shape: f32[1,32], index: 13, kind: input, shape index: {}]
  %s14 = inlined_call_operand.hbm [shape: f32[2,8,32], index: 14, kind: output, shape index: {0}]
  %s15 = inlined_call_operand.hbm [shape: f32[2,8,32], index: 15, kind: output, shape index: {1}]
  %16 = xla_tuple %s14, %s15
  %s17 = sld [smem:[#allocation0]]
  $region105: #{tpu_custom_call.1} parent=0
    _
  %s19 = ssub.s32 1, %s17
  %s20 = scalar_select 0, %s19, %s17
  $region1: #{tpu_custom_call.1} parent=0
    #allocation2 [shape = 'u8[8192]{0}', space=vmem, size = 0x2000, scoped, tag = 'input window, operand 0']
    #allocation3 [shape = 's32[2]{0}', space=sflag, size = 0x8, scoped, tag = 'scoped memory for tpu_custom_call.1']
    #allocation4 [shape = 's32[2]{0}', space=sflag, size = 0x8, scoped, tag = 'scoped memory for tpu_custom_call.1']
    #allocation5 [shape = 'u8[512]{0}', space=vmem, size = 0x400, scoped, tag = 'input window, operand 1, single buffered']
    #allocation6 [shape = 's32[1]{0}', space=sflag, size = 0x4, scoped, tag = 'scoped memory for tpu_custom_call.1']
    #allocation7 [shape = 'u8[8192]{0}', space=vmem, size = 0x2000, scoped, tag = 'output window, operand 0']
    #allocation8 [shape = 'u8[8192]{0}', space=vmem, size = 0x2000, scoped, tag = 'output window, operand 1']
    #allocation9 [shape = 's32[2]{0}', space=sflag, size = 0x8, scoped, tag = 'scoped memory for tpu_custom_call.1']
    %21 = vsyncpa [#allocation3], 0
    %s22 = scalar_lea.sflag [#allocation3], 1
    %23 = vsyncpa %s22, 0
    %24 = vsyncpa [#allocation6], 0
    %25 = vsyncpa [#allocation4], 0
    %s26 = scalar_lea.sflag [#allocation4], 1
    %27 = vsyncpa %s26, 0
    %28 = vsyncpa [#allocation9], 0
    %s29 = scalar_lea.sflag [#allocation9], 1
    %30 = vsyncpa %s29, 0
    loop: start=0, step=1, limit=4
    $region2: #{tpu_custom_call.1} parent=1 // loop_pre_header
      _
    $region3: #{tpu_custom_call.1} parent=1 // loop_header
      %s32 = sphi 0, %s36
      %p33 = scmp.ge.s32.totalorder %s32, 4
      %s42 = sphi 0, %s44
      %s45 = sphi 0, %s42
      %s46 = sphi 0, %s45
      %s62 = sphi 0, %s46
      %s66 = sphi 0, %s66
      %s68 = sphi 0, %s66
      %s69 = sphi 0, %s68
      %s83 = sphi 0, %s69
      %s87 = sphi 0, %s87
      %s89 = sphi 0, %s87
      %s90 = sphi 0, %s89
      %s104 = sphi 0, %s90
      %s108 = sphi 0, %s108
      %s110 = sphi 0, %s108
      %s111 = sphi 0, %s110
      %s125 = sphi 0, %s111
      %s129 = sphi 0, %s129
      %s131 = sphi 0, %s129
      %s132 = sphi 0, %s131
      %s146 = sphi 0, %s132
      %s150 = sphi 0, %s150
      %s152 = sphi 0, %s150
      %s153 = sphi 0, %s152
      %s167 = sphi 0, %s153
      %s171 = sphi 0, %s171
      %s173 = sphi 0, %s171
      %s174 = sphi 0, %s173
      %s188 = sphi 0, %s174
      %s192 = sphi 0, %s192
      %s194 = sphi 0, %s192
      %s195 = sphi 0, %s194
      %s209 = sphi 0, %s195
      %s213 = sphi 0, %s213
      %s215 = sphi 0, %s213
      %s216 = sphi 0, %s215
      %s230 = sphi 0, %s216
      %s234 = sphi 0, %s234
      %s236 = sphi 0, %s234
      %s237 = sphi 0, %s236
      %s251 = sphi 0, %s237
      %s255 = sphi 0, %s255
      %s257 = sphi 0, %s255
      %s258 = sphi 0, %s257
      %s272 = sphi 0, %s258
      %s276 = sphi 0, %s276
      %s278 = sphi 0, %s276
      %s279 = sphi 0, %s278
      %s293 = sphi 0, %s279
      %s297 = sphi 0, %s297
      %s299 = sphi 0, %s297
      %s300 = sphi 0, %s299
      %s314 = sphi 0, %s300
      %s318 = sphi 0, %s318
      %s320 = sphi 0, %s318
      %s321 = sphi 0, %s320
      %s335 = sphi 0, %s321
      %s341 = sphi 0, %s343
      %s344 = sphi 0, %s341
      %s345 = sphi 0, %s344
      %s361 = sphi 0, %s345
      %s367 = sphi 0, %s369
      %s370 = sphi 0, %s367
      %s371 = sphi 0, %s370
      %s387 = sphi 0, %s371
    $region4: #{tpu_custom_call.1} parent=1 // loop_header_branch
      %35 = sbr.rel (%p33) target = $region8
    $region5: #{tpu_custom_call.1} parent=1 // loop_body
      %s37 = ssub.s32 %s32, 1
      %s38 = ssub.s32 %s32, 2
      %s39 = sadd.s32 %s32, 1
      %s40 = ssub.s32 %s32, %s39
      %p41 = scmp.eq.s32.totalorder %s40, 0
      %s43 = sadd.s32 %s42, 1
      %s44 = scalar_select %p41, %s42, %s43
      %p47 = pneg %p41
      %p48 = scmp.eq.s32.totalorder %s32, 1
      %p49 = por %p47, %p48
      %p50 = scmp.ne.s32.totalorder %s42, %s45
      %p51 = scmp.eq.s32.totalorder %s32, 0
      %p52 = por %p50, %p51
      %p53 = scmp.ne.s32.totalorder %s42, %s45
      %p54 = scmp.eq.s32.totalorder %s37, 1
      %p55 = por %p53, %p54
      %p56 = scmp.ne.s32.totalorder %s45, %s46
      %p57 = scmp.eq.s32.totalorder %s37, 0
      %p58 = por %p56, %p57
      %p59 = scmp.ne.s32.totalorder %s45, %s46
      %p60 = scmp.eq.s32.totalorder %s38, 1
      %p61 = por %p59, %p60
      %p63 = scmp.ne.s32.totalorder %s46, %s62
      %p64 = scmp.eq.s32.totalorder %s38, 0
      %p65 = por %p63, %p64
      %s67 = sadd.s32 %s66, 1
      %p70 = scmp.eq.s32.totalorder %s32, 1
      %p71 = scmp.ne.s32.totalorder %s66, %s68
      %p72 = scmp.eq.s32.totalorder %s32, 0
      %p73 = por %p71, %p72
      %p74 = scmp.ne.s32.totalorder %s66, %s68
      %p75 = scmp.eq.s32.totalorder %s37, 1
      %p76 = por %p74, %p75
      %p77 = scmp.ne.s32.totalorder %s68, %s69
      %p78 = scmp.eq.s32.totalorder %s37, 0
      %p79 = por %p77, %p78
      %p80 = scmp.ne.s32.totalorder %s68, %s69
      %p81 = scmp.eq.s32.totalorder %s38, 1
      %p82 = por %p80, %p81
      %p84 = scmp.ne.s32.totalorder %s69, %s83
      %p85 = scmp.eq.s32.totalorder %s38, 0
      %p86 = por %p84, %p85
      %s88 = sadd.s32 %s87, 1
      %p91 = scmp.eq.s32.totalorder %s32, 1
      %p92 = scmp.ne.s32.totalorder %s87, %s89
      %p93 = scmp.eq.s32.totalorder %s32, 0
      %p94 = por %p92, %p93
      %p95 = scmp.ne.s32.totalorder %s87, %s89
      %p96 = scmp.eq.s32.totalorder %s37, 1
      %p97 = por %p95, %p96
      %p98 = scmp.ne.s32.totalorder %s89, %s90
      %p99 = scmp.eq.s32.totalorder %s37, 0
      %p100 = por %p98, %p99
      %p101 = scmp.ne.s32.totalorder %s89, %s90
      %p102 = scmp.eq.s32.totalorder %s38, 1
      %p103 = por %p101, %p102
      %p105 = scmp.ne.s32.totalorder %s90, %s104
      %p106 = scmp.eq.s32.totalorder %s38, 0
      %p107 = por %p105, %p106
      %s109 = sadd.s32 %s108, 1
      %p112 = scmp.eq.s32.totalorder %s32, 1
      %p113 = scmp.ne.s32.totalorder %s108, %s110
      %p114 = scmp.eq.s32.totalorder %s32, 0
      %p115 = por %p113, %p114
      %p116 = scmp.ne.s32.totalorder %s108, %s110
      %p117 = scmp.eq.s32.totalorder %s37, 1
      %p118 = por %p116, %p117
      %p119 = scmp.ne.s32.totalorder %s110, %s111
      %p120 = scmp.eq.s32.totalorder %s37, 0
      %p121 = por %p119, %p120
      %p122 = scmp.ne.s32.totalorder %s110, %s111
      %p123 = scmp.eq.s32.totalorder %s38, 1
      %p124 = por %p122, %p123
      %p126 = scmp.ne.s32.totalorder %s111, %s125
      %p127 = scmp.eq.s32.totalorder %s38, 0
      %p128 = por %p126, %p127
      %s130 = sadd.s32 %s129, 1
      %p133 = scmp.eq.s32.totalorder %s32, 1
      %p134 = scmp.ne.s32.totalorder %s129, %s131
      %p135 = scmp.eq.s32.totalorder %s32, 0
      %p136 = por %p134, %p135
      %p137 = scmp.ne.s32.totalorder %s129, %s131
      %p138 = scmp.eq.s32.totalorder %s37, 1
      %p139 = por %p137, %p138
      %p140 = scmp.ne.s32.totalorder %s131, %s132
      %p141 = scmp.eq.s32.totalorder %s37, 0
      %p142 = por %p140, %p141
      %p143 = scmp.ne.s32.totalorder %s131, %s132
      %p144 = scmp.eq.s32.totalorder %s38, 1
      %p145 = por %p143, %p144
      %p147 = scmp.ne.s32.totalorder %s132, %s146
      %p148 = scmp.eq.s32.totalorder %s38, 0
      %p149 = por %p147, %p148
      %s151 = sadd.s32 %s150, 1
      %p154 = scmp.eq.s32.totalorder %s32, 1
      %p155 = scmp.ne.s32.totalorder %s150, %s152
      %p156 = scmp.eq.s32.totalorder %s32, 0
      %p157 = por %p155, %p156
      %p158 = scmp.ne.s32.totalorder %s150, %s152
      %p159 = scmp.eq.s32.totalorder %s37, 1
      %p160 = por %p158, %p159
      %p161 = scmp.ne.s32.totalorder %s152, %s153
      %p162 = scmp.eq.s32.totalorder %s37, 0
      %p163 = por %p161, %p162
      %p164 = scmp.ne.s32.totalorder %s152, %s153
      %p165 = scmp.eq.s32.totalorder %s38, 1
      %p166 = por %p164, %p165
      %p168 = scmp.ne.s32.totalorder %s153, %s167
      %p169 = scmp.eq.s32.totalorder %s38, 0
      %p170 = por %p168, %p169
      %s172 = sadd.s32 %s171, 1
      %p175 = scmp.eq.s32.totalorder %s32, 1
      %p176 = scmp.ne.s32.totalorder %s171, %s173
      %p177 = scmp.eq.s32.totalorder %s32, 0
      %p178 = por %p176, %p177
      %p179 = scmp.ne.s32.totalorder %s171, %s173
      %p180 = scmp.eq.s32.totalorder %s37, 1
      %p181 = por %p179, %p180
      %p182 = scmp.ne.s32.totalorder %s173, %s174
      %p183 = scmp.eq.s32.totalorder %s37, 0
      %p184 = por %p182, %p183
      %p185 = scmp.ne.s32.totalorder %s173, %s174
      %p186 = scmp.eq.s32.totalorder %s38, 1
      %p187 = por %p185, %p186
      %p189 = scmp.ne.s32.totalorder %s174, %s188
      %p190 = scmp.eq.s32.totalorder %s38, 0
      %p191 = por %p189, %p190
      %s193 = sadd.s32 %s192, 1
      %p196 = scmp.eq.s32.totalorder %s32, 1
      %p197 = scmp.ne.s32.totalorder %s192, %s194
      %p198 = scmp.eq.s32.totalorder %s32, 0
      %p199 = por %p197, %p198
      %p200 = scmp.ne.s32.totalorder %s192, %s194
      %p201 = scmp.eq.s32.totalorder %s37, 1
      %p202 = por %p200, %p201
      %p203 = scmp.ne.s32.totalorder %s194, %s195
      %p204 = scmp.eq.s32.totalorder %s37, 0
      %p205 = por %p203, %p204
      %p206 = scmp.ne.s32.totalorder %s194, %s195
      %p207 = scmp.eq.s32.totalorder %s38, 1
      %p208 = por %p206, %p207
      %p210 = scmp.ne.s32.totalorder %s195, %s209
      %p211 = scmp.eq.s32.totalorder %s38, 0
      %p212 = por %p210, %p211
      %s214 = sadd.s32 %s213, 1
      %p217 = scmp.eq.s32.totalorder %s32, 1
      %p218 = scmp.ne.s32.totalorder %s213, %s215
      %p219 = scmp.eq.s32.totalorder %s32, 0
      %p220 = por %p218, %p219
      %p221 = scmp.ne.s32.totalorder %s213, %s215
      %p222 = scmp.eq.s32.totalorder %s37, 1
      %p223 = por %p221, %p222
      %p224 = scmp.ne.s32.totalorder %s215, %s216
      %p225 = scmp.eq.s32.totalorder %s37, 0
      %p226 = por %p224, %p225
      %p227 = scmp.ne.s32.totalorder %s215, %s216
      %p228 = scmp.eq.s32.totalorder %s38, 1
      %p229 = por %p227, %p228
      %p231 = scmp.ne.s32.totalorder %s216, %s230
      %p232 = scmp.eq.s32.totalorder %s38, 0
      %p233 = por %p231, %p232
      %s235 = sadd.s32 %s234, 1
      %p238 = scmp.eq.s32.totalorder %s32, 1
      %p239 = scmp.ne.s32.totalorder %s234, %s236
      %p240 = scmp.eq.s32.totalorder %s32, 0
      %p241 = por %p239, %p240
      %p242 = scmp.ne.s32.totalorder %s234, %s236
      %p243 = scmp.eq.s32.totalorder %s37, 1
      %p244 = por %p242, %p243
      %p245 = scmp.ne.s32.totalorder %s236, %s237
      %p246 = scmp.eq.s32.totalorder %s37, 0
      %p247 = por %p245, %p246
      %p248 = scmp.ne.s32.totalorder %s236, %s237
      %p249 = scmp.eq.s32.totalorder %s38, 1
      %p250 = por %p248, %p249
      %p252 = scmp.ne.s32.totalorder %s237, %s251
      %p253 = scmp.eq.s32.totalorder %s38, 0
      %p254 = por %p252, %p253
      %s256 = sadd.s32 %s255, 1
      %p259 = scmp.eq.s32.totalorder %s32, 1
      %p260 = scmp.ne.s32.totalorder %s255, %s257
      %p261 = scmp.eq.s32.totalorder %s32, 0
      %p262 = por %p260, %p261
      %p263 = scmp.ne.s32.totalorder %s255, %s257
      %p264 = scmp.eq.s32.totalorder %s37, 1
      %p265 = por %p263, %p264
      %p266 = scmp.ne.s32.totalorder %s257, %s258
      %p267 = scmp.eq.s32.totalorder %s37, 0
      %p268 = por %p266, %p267
      %p269 = scmp.ne.s32.totalorder %s257, %s258
      %p270 = scmp.eq.s32.totalorder %s38, 1
      %p271 = por %p269, %p270
      %p273 = scmp.ne.s32.totalorder %s258, %s272
      %p274 = scmp.eq.s32.totalorder %s38, 0
      %p275 = por %p273, %p274
      %s277 = sadd.s32 %s276, 1
      %p280 = scmp.eq.s32.totalorder %s32, 1
      %p281 = scmp.ne.s32.totalorder %s276, %s278
      %p282 = scmp.eq.s32.totalorder %s32, 0
      %p283 = por %p281, %p282
      %p284 = scmp.ne.s32.totalorder %s276, %s278
      %p285 = scmp.eq.s32.totalorder %s37, 1
      %p286 = por %p284, %p285
      %p287 = scmp.ne.s32.totalorder %s278, %s279
      %p288 = scmp.eq.s32.totalorder %s37, 0
      %p289 = por %p287, %p288
      %p290 = scmp.ne.s32.totalorder %s278, %s279
      %p291 = scmp.eq.s32.totalorder %s38, 1
      %p292 = por %p290, %p291
      %p294 = scmp.ne.s32.totalorder %s279, %s293
      %p295 = scmp.eq.s32.totalorder %s38, 0
      %p296 = por %p294, %p295
      %s298 = sadd.s32 %s297, 1
      %p301 = scmp.eq.s32.totalorder %s32, 1
      %p302 = scmp.ne.s32.totalorder %s297, %s299
      %p303 = scmp.eq.s32.totalorder %s32, 0
      %p304 = por %p302, %p303
      %p305 = scmp.ne.s32.totalorder %s297, %s299
      %p306 = scmp.eq.s32.totalorder %s37, 1
      %p307 = por %p305, %p306
      %p308 = scmp.ne.s32.totalorder %s299, %s300
      %p309 = scmp.eq.s32.totalorder %s37, 0
      %p310 = por %p308, %p309
      %p311 = scmp.ne.s32.totalorder %s299, %s300
      %p312 = scmp.eq.s32.totalorder %s38, 1
      %p313 = por %p311, %p312
      %p315 = scmp.ne.s32.totalorder %s300, %s314
      %p316 = scmp.eq.s32.totalorder %s38, 0
      %p317 = por %p315, %p316
      %s319 = sadd.s32 %s318, 1
      %p322 = scmp.eq.s32.totalorder %s32, 1
      %p323 = scmp.ne.s32.totalorder %s318, %s320
      %p324 = scmp.eq.s32.totalorder %s32, 0
      %p325 = por %p323, %p324
      %p326 = scmp.ne.s32.totalorder %s318, %s320
      %p327 = scmp.eq.s32.totalorder %s37, 1
      %p328 = por %p326, %p327
      %p329 = scmp.ne.s32.totalorder %s320, %s321
      %p330 = scmp.eq.s32.totalorder %s37, 0
      %p331 = por %p329, %p330
      %p332 = scmp.ne.s32.totalorder %s320, %s321
      %p333 = scmp.eq.s32.totalorder %s38, 1
      %p334 = por %p332, %p333
      %p336 = scmp.ne.s32.totalorder %s321, %s335
      %p337 = scmp.eq.s32.totalorder %s38, 0
      %p338 = por %p336, %p337
      %s339 = ssub.s32 %s32, %s39
      %p340 = scmp.eq.s32.totalorder %s339, 0
      %s342 = sadd.s32 %s341, 1
      %s343 = scalar_select %p340, %s341, %s342
      %p346 = pneg %p340
      %p347 = scmp.eq.s32.totalorder %s32, 1
      %p348 = por %p346, %p347
      %p349 = scmp.ne.s32.totalorder %s341, %s344
      %p350 = scmp.eq.s32.totalorder %s32, 0
      %p351 = por %p349, %p350
      %p352 = scmp.ne.s32.totalorder %s341, %s344
      %p353 = scmp.eq.s32.totalorder %s37, 1
      %p354 = por %p352, %p353
      %p355 = scmp.ne.s32.totalorder %s344, %s345
      %p356 = scmp.eq.s32.totalorder %s37, 0
      %p357 = por %p355, %p356
      %p358 = scmp.ne.s32.totalorder %s344, %s345
      %p359 = scmp.eq.s32.totalorder %s38, 1
      %p360 = por %p358, %p359
      %p362 = scmp.ne.s32.totalorder %s345, %s361
      %p363 = scmp.eq.s32.totalorder %s38, 0
      %p364 = por %p362, %p363
      %s365 = ssub.s32 %s32, %s39
      %p366 = scmp.eq.s32.totalorder %s365, 0
      %s368 = sadd.s32 %s367, 1
      %s369 = scalar_select %p366, %s367, %s368
      %p372 = pneg %p366
      %p373 = scmp.eq.s32.totalorder %s32, 1
      %p374 = por %p372, %p373
      %p375 = scmp.ne.s32.totalorder %s367, %s370
      %p376 = scmp.eq.s32.totalorder %s32, 0
      %p377 = por %p375, %p376
      %p378 = scmp.ne.s32.totalorder %s367, %s370
      %p379 = scmp.eq.s32.totalorder %s37, 1
      %p380 = por %p378, %p379
      %p381 = scmp.ne.s32.totalorder %s370, %s371
      %p382 = scmp.eq.s32.totalorder %s37, 0
      %p383 = por %p381, %p382
      %p384 = scmp.ne.s32.totalorder %s370, %s371
      %p385 = scmp.eq.s32.totalorder %s38, 1
      %p386 = por %p384, %p385
      %p388 = scmp.ne.s32.totalorder %s371, %s387
      %p389 = scmp.eq.s32.totalorder %s38, 0
      %p390 = por %p388, %p389
      %p391 = scmp.le.s32.totalorder 1, %s32
      %p392 = scmp.lt.s32.totalorder %s32, 3
      %p393 = pnand %p391, %p392
      %p394 = pneg %p393
      // Predicated region
      $region9: #{tpu_custom_call.1} parent=5 // pred_check
        _
      $region10: #{tpu_custom_call.1} parent=5 // pred_check_branch
        %396 = sbr.rel (%p393) target = $region12
      $region11: #{tpu_custom_call.1} parent=5 // pred_region
        %s397 = ssub.s32 %s32, 1
        // Predicated region
        $region13: #{tpu_custom_call.1} parent=11 // pred_check
          %p398 = pneg %p79
        $region14: #{tpu_custom_call.1} parent=11 // pred_check_branch
          %400 = sbr.rel (%p398) target = $region16
        $region15: #{tpu_custom_call.1} parent=11 // pred_region
          %402 = vsyncadd [#allocation6], 0
          %s404 = sshll.u32 %s1, 4
          %s405 = int_to_ptr.hbm [resolvable:$true] %s404
          %s406 = sshll.u32 [#allocation5], 4
          %s407 = int_to_ptr.vmem [resolvable:$true] %s406
          %409 = dma.hbm_to_vmem [thread:$0]  %s405, 16, %s407, [#allocation6]
        $region16: #{tpu_custom_call.1} parent=11 // pred_fallthru
          _
        // Predicated region
        $region17: #{tpu_custom_call.1} parent=11 // pred_check
          %p410 = pneg %p100
        $region18: #{tpu_custom_call.1} parent=11 // pred_check_branch
          %412 = sbr.rel (%p410) target = $region20
        $region19: #{tpu_custom_call.1} parent=11 // pred_region
          _
        $region20: #{tpu_custom_call.1} parent=11 // pred_fallthru
          _
        // Predicated region
        $region21: #{tpu_custom_call.1} parent=11 // pred_check
          %p413 = pneg %p121
        $region22: #{tpu_custom_call.1} parent=11 // pred_check_branch
          %415 = sbr.rel (%p413) target = $region24
        $region23: #{tpu_custom_call.1} parent=11 // pred_region
          _
        $region24: #{tpu_custom_call.1} parent=11 // pred_fallthru
          _
        // Predicated region
        $region25: #{tpu_custom_call.1} parent=11 // pred_check
          %p416 = pneg %p142
        $region26: #{tpu_custom_call.1} parent=11 // pred_check_branch
          %418 = sbr.rel (%p416) target = $region28
        $region27: #{tpu_custom_call.1} parent=11 // pred_region
          _
        $region28: #{tpu_custom_call.1} parent=11 // pred_fallthru
          _
        // Predicated region
        $region29: #{tpu_custom_call.1} parent=11 // pred_check
          %p419 = pneg %p163
        $region30: #{tpu_custom_call.1} parent=11 // pred_check_branch
          %421 = sbr.rel (%p419) target = $region32
        $region31: #{tpu_custom_call.1} parent=11 // pred_region
          _
        $region32: #{tpu_custom_call.1} parent=11 // pred_fallthru
          _
        // Predicated region
        $region33: #{tpu_custom_call.1} parent=11 // pred_check
          %p422 = pneg %p184
        $region34: #{tpu_custom_call.1} parent=11 // pred_check_branch
          %424 = sbr.rel (%p422) target = $region36
        $region35: #{tpu_custom_call.1} parent=11 // pred_region
          _
        $region36: #{tpu_custom_call.1} parent=11 // pred_fallthru
          _
        // Predicated region
        $region37: #{tpu_custom_call.1} parent=11 // pred_check
          %p425 = pneg %p205
        $region38: #{tpu_custom_call.1} parent=11 // pred_check_branch
          %427 = sbr.rel (%p425) target = $region40
        $region39: #{tpu_custom_call.1} parent=11 // pred_region
          _
        $region40: #{tpu_custom_call.1} parent=11 // pred_fallthru
          _
        // Predicated region
        $region41: #{tpu_custom_call.1} parent=11 // pred_check
          %p428 = pneg %p226
        $region42: #{tpu_custom_call.1} parent=11 // pred_check_branch
          %430 = sbr.rel (%p428) target = $region44
        $region43: #{tpu_custom_call.1} parent=11 // pred_region
          _
        $region44: #{tpu_custom_call.1} parent=11 // pred_fallthru
          _
        // Predicated region
        $region45: #{tpu_custom_call.1} parent=11 // pred_check
          %p431 = pneg %p247
        $region46: #{tpu_custom_call.1} parent=11 // pred_check_branch
          %433 = sbr.rel (%p431) target = $region48
        $region47: #{tpu_custom_call.1} parent=11 // pred_region
          _
        $region48: #{tpu_custom_call.1} parent=11 // pred_fallthru
          _
        // Predicated region
        $region49: #{tpu_custom_call.1} parent=11 // pred_check
          %p434 = pneg %p268
        $region50: #{tpu_custom_call.1} parent=11 // pred_check_branch
          %436 = sbr.rel (%p434) target = $region52
        $region51: #{tpu_custom_call.1} parent=11 // pred_region
          _
        $region52: #{tpu_custom_call.1} parent=11 // pred_fallthru
          _
        // Predicated region
        $region53: #{tpu_custom_call.1} parent=11 // pred_check
          %p437 = pneg %p289
        $region54: #{tpu_custom_call.1} parent=11 // pred_check_branch
          %439 = sbr.rel (%p437) target = $region56
        $region55: #{tpu_custom_call.1} parent=11 // pred_region
          _
        $region56: #{tpu_custom_call.1} parent=11 // pred_fallthru
          _
        // Predicated region
        $region57: #{tpu_custom_call.1} parent=11 // pred_check
          %p440 = pneg %p310
        $region58: #{tpu_custom_call.1} parent=11 // pred_check_branch
          %442 = sbr.rel (%p440) target = $region60
        $region59: #{tpu_custom_call.1} parent=11 // pred_region
          _
        $region60: #{tpu_custom_call.1} parent=11 // pred_fallthru
          _
        // Predicated region
        $region61: #{tpu_custom_call.1} parent=11 // pred_check
          %p443 = pneg %p331
        $region62: #{tpu_custom_call.1} parent=11 // pred_check_branch
          %445 = sbr.rel (%p443) target = $region64
        $region63: #{tpu_custom_call.1} parent=11 // pred_region
          _
        $region64: #{tpu_custom_call.1} parent=11 // pred_fallthru
          _
      $region12: #{tpu_custom_call.1} parent=5 // pred_fallthru
        _
      %p446 = scmp.lt.s32.totalorder %s32, 2
      // Predicated region
      $region65: #{tpu_custom_call.1} parent=5 // pred_check
        %p447 = pneg %p446
      $region66: #{tpu_custom_call.1} parent=5 // pred_check_branch
        %449 = sbr.rel (%p447) target = $region68
      $region67: #{tpu_custom_call.1} parent=5 // pred_region
        // Predicated region
        $region69: #{tpu_custom_call.1} parent=67 // pred_check
          %p450 = pneg %p52
        $region70: #{tpu_custom_call.1} parent=67 // pred_check_branch
          %452 = sbr.rel (%p450) target = $region72
        $region71: #{tpu_custom_call.1} parent=67 // pred_region
          %s453 = sand.u32 %s42, 1
          %s454 = scalar_lea.sflag [#allocation3], %s453
          %s455 = sand.u32 %s42, 1
          %s456 = smul.addr %s455, 8
          %s457 = scalar_lea.vmem [#allocation2], %s456
          %459 = vsyncadd %s454, 0
          %s460 = smul.addr %s32, 8
          %s461 = scalar_lea.hbm %s0, %s460
          %s463 = sshll.u32 %s461, 4
          %s464 = int_to_ptr.hbm [resolvable:$true] %s463
          %s465 = sshll.u32 %s457, 4
          %s466 = int_to_ptr.vmem [resolvable:$true] %s465
          %468 = dma.hbm_to_vmem [thread:$0]  %s464, 128, %s466, %s454
        $region72: #{tpu_custom_call.1} parent=67 // pred_fallthru
          _
      $region68: #{tpu_custom_call.1} parent=5 // pred_fallthru
        _
      %p469 = scmp.le.s32.totalorder 1, %s32
      %p470 = scmp.lt.s32.totalorder %s32, 3
      %p471 = pnand %p469, %p470
      %p472 = pneg %p471
      // Predicated region
      $region73: #{tpu_custom_call.1} parent=5 // pred_check
        _
      $region74: #{tpu_custom_call.1} parent=5 // pred_check_branch
        %474 = sbr.rel (%p471) target = $region76
      $region75: #{tpu_custom_call.1} parent=5 // pred_region
        %s475 = ssub.s32 %s32, 1
        %s476 = sand.u32 %s45, 1
        %s477 = scalar_lea.sflag [#allocation3], %s476
        %s478 = sand.u32 %s45, 1
        %s479 = smul.addr %s478, 8
        %s480 = scalar_lea.vmem [#allocation2], %s479
        // Predicated region
        $region77: #{tpu_custom_call.1} parent=75 // pred_check
          %p481 = pneg %p58
        $region78: #{tpu_custom_call.1} parent=75 // pred_check_branch
          %483 = sbr.rel (%p481) target = $region80
        $region79: #{tpu_custom_call.1} parent=75 // pred_region
          %485 = dma.done %s477, 128
        $region80: #{tpu_custom_call.1} parent=75 // pred_fallthru
          _
        // Predicated region
        $region81: #{tpu_custom_call.1} parent=75 // pred_check
          %p486 = pneg %p79
        $region82: #{tpu_custom_call.1} parent=75 // pred_check_branch
          %488 = sbr.rel (%p486) target = $region84
        $region83: #{tpu_custom_call.1} parent=75 // pred_region
          %490 = dma.done [#allocation6], 16
        $region84: #{tpu_custom_call.1} parent=75 // pred_fallthru
          _
        %s491 = sand.u32 %s45, 1
        %s492 = scalar_lea.sflag [#allocation3], %s491
        %s493 = sand.u32 %s45, 1
        %s494 = smul.addr %s493, 8
        %s495 = scalar_lea.vmem [#allocation2], %s494
        %p496 = pneg %p58
        %p497 = pneg %p55
        %p498 = pneg %p79
        %p499 = pneg %p76
        %p500 = pneg %p100
        %p501 = pneg %p97
        %p502 = pneg %p121
        %p503 = pneg %p118
        %p504 = pneg %p142
        %p505 = pneg %p139
        %p506 = pneg %p163
        %p507 = pneg %p160
        %p508 = pneg %p184
        %p509 = pneg %p181
        %p510 = pneg %p205
        %p511 = pneg %p202
        %p512 = pneg %p226
        %p513 = pneg %p223
        %p514 = pneg %p247
        %p515 = pneg %p244
        %p516 = pneg %p268
        %p517 = pneg %p265
        %p518 = pneg %p289
        %p519 = pneg %p286
        %p520 = pneg %p310
        %p521 = pneg %p307
        %p522 = pneg %p331
        %p523 = pneg %p328
        %p524 = pneg %p357
        %p525 = pneg %p354
        %s526 = sand.u32 %s344, 1
        %s527 = scalar_lea.sflag [#allocation4], %s526
        %s528 = sand.u32 %s344, 1
        %s529 = smul.addr %s528, 8
        %s530 = scalar_lea.vmem [#allocation7], %s529
        %p531 = pneg %p383
        %p532 = pneg %p380
        %s533 = sand.u32 %s370, 1
        %s534 = scalar_lea.sflag [#allocation9], %s533
        %s535 = sand.u32 %s370, 1
        %s536 = smul.addr %s535, 8
        %s537 = scalar_lea.vmem [#allocation8], %s536
        %v538 = vld [vmem:[%s480] sm:$0xff]
        %v539 = vld [vmem:[#allocation5] sm:$0x1]
        %v540 = vld [vmem:[%s2] sm:$0x1]
        %vm541 = vcmask 261120
        %v542 = vsel %vm541, %v538, 0.0
        %543 = vadd.xlane.f32.xlu0 %v542
        %v544 = vpop.xlane.xlu0 %543
        %v545 = vrcp.pop 32.0
        %v546 = vmul.f32 32.0, %v545
        %v547 = vsub.f32 1.0, %v546
        %v548 = vmul.f32 %v545, %v547
        %v549 = vadd.f32 %v545, %v548
        %vm550 = vweird.f32 %v545
        %v551 = vsel %vm550, %v545, %v549
        %v552 = vmul.f32 %v544, %v551
        %v553 = vsub.f32 %v538, %v552
        %v554 = vmul.f32 %v553, %v553
        %v555 = vsel %vm541, %v554, 0.0
        %556 = vadd.xlane.f32.xlu0 %v555
        %v557 = vpop.xlane.xlu0 %556
        %v558 = vmul.f32 %v557, %v551
        %v559 = vadd.f32 %v558, 1e-05
        %v560 = vrsqrt.pop %v559
        %v561 = vmul.f32 %v560, %v559
        %v562 = vmul.f32 %v561, %v560
        %v563 = vmul.f32 0.5, %v562
        %v564 = vsub.f32 1.5, %v563
        %v565 = vmul.f32 %v560, %v564
        %vm566 = vweird.f32 %v559
        %vm567 = vweird.f32 %v560
        %vm568 = vmor %vm566, %vm567
        %v569 = vsel %vm568, %v560, %v565
        %v570 = vmul.f32 %v553, %v569
        %v572 = vperm.slane %v539, 0
        %v574 = vmul.f32 %v570, %v572
        %v576 = vperm.slane %v540, 0
        %v578 = vadd.f32 %v574, %v576
        %v579 = vld [vmem:[%s3] sm:$0xff]
        %v580 = vld [vmem:[%s3 + $0x8] sm:$0xff]
        %v581 = vld [vmem:[%s3 + $0x10] sm:$0xff]
        %v582 = vld [vmem:[%s3 + $0x18] sm:$0xff]
        %v584 = vsel %vm541, %v578, 0
        %586 = vmatpush.msra.mxu0 0.0
        %587 = vmatpush.msra.mxu0 0.0
        %588 = vmatpush.msra.mxu0 0.0
        %589 = vmatpush.msra.mxu0 0.0
        %590 = vmatpush.msra.mxu0 0.0
        %591 = vmatpush.msra.mxu0 0.0
        %592 = vmatpush.msra.mxu0 0.0
        %593 = vmatpush.msra.mxu0 0.0
        %594 = vmatpush.msra.mxu0 0.0
        %595 = vmatpush.msra.mxu0 0.0
        %596 = vmatpush.msra.mxu0 0.0
        %597 = vmatpush.msra.mxu0 0.0
        %598 = vmatpush.msra.mxu0 %v582
        %599 = vmatpush.msra.mxu0 %v581
        %600 = vmatpush.msra.mxu0 %v580
        %601 = vmatpush.msra.mxu0 %v579
        %602 = vmatmul.f32.gmra.mxu0 %v584
        %v603 = vpop.f32.mrf.mxu0
        %v604 = vadd.f32 0.0, %v603
        %605 = vdwg.mxu0
        %v606 = vld [vmem:[%s4] sm:$0xff]
        %v607 = vld [vmem:[%s4 + $0x8] sm:$0xff]
        %v608 = vld [vmem:[%s4 + $0x10] sm:$0xff]
        %v609 = vld [vmem:[%s4 + $0x18] sm:$0xff]
        %610 = vmatpush.msra.mxu0 0.0
        %611 = vmatpush.msra.mxu0 0.0
        %612 = vmatpush.msra.mxu0 0.0
        %613 = vmatpush.msra.mxu0 0.0
        %614 = vmatpush.msra.mxu0 0.0
        %615 = vmatpush.msra.mxu0 0.0
        %616 = vmatpush.msra.mxu0 0.0
        %617 = vmatpush.msra.mxu0 0.0
        %618 = vmatpush.msra.mxu0 0.0
        %619 = vmatpush.msra.mxu0 0.0
        %620 = vmatpush.msra.mxu0 0.0
        %621 = vmatpush.msra.mxu0 0.0
        %622 = vmatpush.msra.mxu0 %v609
        %623 = vmatpush.msra.mxu0 %v608
        %624 = vmatpush.msra.mxu0 %v607
        %625 = vmatpush.msra.mxu0 %v606
        %626 = vmatmul.f32.gmra.mxu0 %v584
        %v627 = vpop.f32.mrf.mxu0
        %v628 = vadd.f32 0.0, %v627
        %629 = vdwg.mxu0
        %v630 = vld [vmem:[%s5] sm:$0xff]
        %v631 = vld [vmem:[%s5 + $0x8] sm:$0xff]
        %v632 = vld [vmem:[%s5 + $0x10] sm:$0xff]
        %v633 = vld [vmem:[%s5 + $0x18] sm:$0xff]
        %634 = vmatpush.msra.mxu0 0.0
        %635 = vmatpush.msra.mxu0 0.0
        %636 = vmatpush.msra.mxu0 0.0
        %637 = vmatpush.msra.mxu0 0.0
        %638 = vmatpush.msra.mxu0 0.0
        %639 = vmatpush.msra.mxu0 0.0
        %640 = vmatpush.msra.mxu0 0.0
        %641 = vmatpush.msra.mxu0 0.0
        %642 = vmatpush.msra.mxu0 0.0
        %643 = vmatpush.msra.mxu0 0.0
        %644 = vmatpush.msra.mxu0 0.0
        %645 = vmatpush.msra.mxu0 0.0
        %646 = vmatpush.msra.mxu0 %v633
        %647 = vmatpush.msra.mxu0 %v632
        %648 = vmatpush.msra.mxu0 %v631
        %649 = vmatpush.msra.mxu0 %v630
        %650 = vmatmul.f32.gmra.mxu0 %v584
        %v651 = vpop.f32.mrf.mxu0
        %v652 = vadd.f32 0.0, %v651
        %653 = vdwg.mxu0
        %654 = vst.msk [vmem:[%s537] sm:$0xff] %vm541, %v652
        %vm655 = vcmask 64512
        %v657 = vsel %vm655, %v604, 0
        %v660 = vsel %vm655, %v628, 0
        %662 = vmatpush.xpose.msra.mxu0 0.0
        %663 = vmatpush.xpose.msra.mxu0 0.0
        %664 = vmatpush.xpose.msra.mxu0 0.0
        %665 = vmatpush.xpose.msra.mxu0 0.0
        %666 = vmatpush.xpose.msra.mxu0 0.0
        %667 = vmatpush.xpose.msra.mxu0 0.0
        %668 = vmatpush.xpose.msra.mxu0 0.0
        %669 = vmatpush.xpose.msra.mxu0 0.0
        %670 = vmatpush.xpose.msra.mxu0 0.0
        %671 = vmatpush.xpose.msra.mxu0 0.0
        %672 = vmatpush.xpose.msra.mxu0 0.0
        %673 = vmatpush.xpose.msra.mxu0 0.0
        %674 = vmatpush.xpose.msra.mxu0 0.0
        %675 = vmatpush.xpose.msra.mxu0 0.0
        %676 = vmatpush.xpose.msra.mxu0 0.0
        %677 = vmatpush.xpose.msra.mxu0 %v660
        %678 = vmatmul.f32.gmra.mxu0 %v657
        %v679 = vpop.f32.mrf.mxu0
        %v680 = vadd.f32 0.0, %v679
        %681 = vdwg.mxu0
        %v682 = vsel %vm655, %v680, -inf
        %683 = vmax.xlane.f32.xlu0 %v682
        %v684 = vpop.xlane.xlu0 %683
        %v685 = vsub.f32 %v680, %v684
        %v686 = vmul.f32 %v685, 1.442695
        %v687 = vpow.pop %v686
        %v688 = vsel %vm655, %v687, 0.0
        %689 = vadd.xlane.f32.xlu0 %v688
        %v690 = vpop.xlane.xlu0 %689
        %v691 = vrcp.pop %v690
        %v692 = vmul.f32 %v690, %v691
        %v693 = vsub.f32 1.0, %v692
        %v694 = vmul.f32 %v691, %v693
        %v695 = vadd.f32 %v691, %v694
        %vm696 = vweird.f32 %v690
        %vm697 = vweird.f32 %v691
        %vm698 = vmor %vm696, %vm697
        %v699 = vsel %vm698, %v691, %v695
        %v700 = vand.u32 2147483647, %v690
        %vm701 = vcmp.eq.f32.partialorder %v700, 8.507059e+37
        %v702 = vand.u32 %v690, 2147483648
        %v703 = vor.u32 1.1754944e-38, %v702
        %v704 = vsel %vm701, %v703, %v699
        %v706 = vsel %vm655, %v687, 0
        %708 = vmatpush.msra.mxu0 0.0
        %709 = vmatpush.msra.mxu0 0.0
        %710 = vmatpush.msra.mxu0 0.0
        %711 = vmatpush.msra.mxu0 0.0
        %712 = vmatpush.msra.mxu0 0.0
        %713 = vmatpush.msra.mxu0 0.0
        %714 = vmatpush.msra.mxu0 0.0
        %715 = vmatpush.msra.mxu0 0.0
        %716 = vmatpush.msra.mxu0 0.0
        %717 = vmatpush.msra.mxu0 0.0
        %718 = vmatpush.msra.mxu0 0.0
        %719 = vmatpush.msra.mxu0 0.0
        %720 = vmatpush.msra.mxu0 0.0
        %721 = vmatpush.msra.mxu0 0.0
        %722 = vmatpush.msra.mxu0 0.0
        %723 = vmatpush.msra.mxu0 %v652
        %724 = vmatmul.f32.gmra.mxu0 %v706
        %v725 = vpop.f32.mrf.mxu0
        %v726 = vadd.f32 0.0, %v725
        %727 = vdwg.mxu0
        %v728 = vmul.f32 %v726, %v704
        %v729 = vsub.f32 %v652, %v728
        %730 = vmatpush.msra.mxu0 0.0
        %731 = vmatpush.msra.mxu0 0.0
        %732 = vmatpush.msra.mxu0 0.0
        %733 = vmatpush.msra.mxu0 0.0
        %734 = vmatpush.msra.mxu0 0.0
        %735 = vmatpush.msra.mxu0 0.0
        %736 = vmatpush.msra.mxu0 0.0
        %737 = vmatpush.msra.mxu0 0.0
        %738 = vmatpush.msra.mxu0 0.0
        %739 = vmatpush.msra.mxu0 0.0
        %740 = vmatpush.msra.mxu0 0.0
        %741 = vmatpush.msra.mxu0 0.0
        %742 = vmatpush.msra.mxu0 0.0
        %743 = vmatpush.msra.mxu0 0.0
        %744 = vmatpush.msra.mxu0 0.0
        %745 = vmatpush.msra.mxu0 %v729
        %746 = vmatmul.f32.gmra.mxu0 %v706
        %v747 = vpop.f32.mrf.mxu0
        %v748 = vadd.f32 0.0, %v747
        %749 = vdwg.mxu0
        %v750 = vmul.f32 %v748, %v704
        %v751 = vadd.f32 %v728, %v750
        %v752 = vld [vmem:[%s6] sm:$0xff]
        %753 = vrot.lane.b32.xlu0 %v604, 120
        %v754 = vpop.permute.xlu0 %753
        %755 = vrot.lane.b32.xlu0 %v628, 120
        %v756 = vpop.permute.xlu0 %755
        %v757 = vsel %vm655, %v754, 0
        %v759 = vsel %vm655, %v756, 0
        %761 = vmatpush.xpose.msra.mxu0 0.0
        %762 = vmatpush.xpose.msra.mxu0 0.0
        %763 = vmatpush.xpose.msra.mxu0 0.0
        %764 = vmatpush.xpose.msra.mxu0 0.0
        %765 = vmatpush.xpose.msra.mxu0 0.0
        %766 = vmatpush.xpose.msra.mxu0 0.0
        %767 = vmatpush.xpose.msra.mxu0 0.0
        %768 = vmatpush.xpose.msra.mxu0 0.0
        %769 = vmatpush.xpose.msra.mxu0 0.0
        %770 = vmatpush.xpose.msra.mxu0 0.0
        %771 = vmatpush.xpose.msra.mxu0 0.0
        %772 = vmatpush.xpose.msra.mxu0 0.0
        %773 = vmatpush.xpose.msra.mxu0 0.0
        %774 = vmatpush.xpose.msra.mxu0 0.0
        %775 = vmatpush.xpose.msra.mxu0 0.0
        %776 = vmatpush.xpose.msra.mxu0 %v759
        %777 = vmatmul.f32.gmra.mxu0 %v757
        %v778 = vpop.f32.mrf.mxu0
        %v779 = vadd.f32 0.0, %v778
        %780 = vdwg.mxu0
        %v781 = vsel %vm655, %v779, -inf
        %782 = vmax.xlane.f32.xlu0 %v781
        %v783 = vpop.xlane.xlu0 %782
        %v784 = vsub.f32 %v779, %v783
        %v785 = vmul.f32 %v784, 1.442695
        %v786 = vpow.pop %v785
        %v787 = vsel %vm655, %v786, 0.0
        %788 = vadd.xlane.f32.xlu0 %v787
        %v789 = vpop.xlane.xlu0 %788
        %v790 = vrcp.pop %v789
        %v791 = vmul.f32 %v789, %v790
        %v792 = vsub.f32 1.0, %v791
        %v793 = vmul.f32 %v790, %v792
        %v794 = vadd.f32 %v790, %v793
        %vm795 = vweird.f32 %v789
        %vm796 = vweird.f32 %v790
        %vm797 = vmor %vm795, %vm796
        %v798 = vsel %vm797, %v790, %v794
        %v799 = vand.u32 2147483647, %v789
        %vm800 = vcmp.eq.f32.partialorder %v799, 8.507059e+37
        %v801 = vand.u32 %v789, 2147483648
        %v802 = vor.u32 1.1754944e-38, %v801
        %v803 = vsel %vm800, %v802, %v798
        %805 = vrot.lane.b32.xlu0 %v652, 120
        %v806 = vpop.permute.xlu0 %805
        %v809 = vsel %vm655, %v786, 0
        %811 = vmatpush.msra.mxu0 0.0
        %812 = vmatpush.msra.mxu0 0.0
        %813 = vmatpush.msra.mxu0 0.0
        %814 = vmatpush.msra.mxu0 0.0
        %815 = vmatpush.msra.mxu0 0.0
        %816 = vmatpush.msra.mxu0 0.0
        %817 = vmatpush.msra.mxu0 0.0
        %818 = vmatpush.msra.mxu0 0.0
        %819 = vmatpush.msra.mxu0 0.0
        %820 = vmatpush.msra.mxu0 0.0
        %821 = vmatpush.msra.mxu0 0.0
        %822 = vmatpush.msra.mxu0 0.0
        %823 = vmatpush.msra.mxu0 0.0
        %824 = vmatpush.msra.mxu0 0.0
        %825 = vmatpush.msra.mxu0 0.0
        %826 = vmatpush.msra.mxu0 %v806
        %827 = vmatmul.f32.gmra.mxu0 %v809
        %v828 = vpop.f32.mrf.mxu0
        %v829 = vadd.f32 0.0, %v828
        %830 = vdwg.mxu0
        %v831 = vmul.f32 %v829, %v803
        %833 = vrot.lane.b32.xlu0 %v831, 8
        %v834 = vpop.permute.xlu0 %833
        %v836 = vsub.f32 %v652, %v834
        %838 = vrot.lane.b32.xlu0 %v836, 120
        %v839 = vpop.permute.xlu0 %838
        %841 = vmatpush.msra.mxu0 0.0
        %842 = vmatpush.msra.mxu0 0.0
        %843 = vmatpush.msra.mxu0 0.0
        %844 = vmatpush.msra.mxu0 0.0
        %845 = vmatpush.msra.mxu0 0.0
        %846 = vmatpush.msra.mxu0 0.0
        %847 = vmatpush.msra.mxu0 0.0
        %848 = vmatpush.msra.mxu0 0.0
        %849 = vmatpush.msra.mxu0 0.0
        %850 = vmatpush.msra.mxu0 0.0
        %851 = vmatpush.msra.mxu0 0.0
        %852 = vmatpush.msra.mxu0 0.0
        %853 = vmatpush.msra.mxu0 0.0
        %854 = vmatpush.msra.mxu0 0.0
        %855 = vmatpush.msra.mxu0 0.0
        %856 = vmatpush.msra.mxu0 %v839
        %857 = vmatmul.f32.gmra.mxu0 %v809
        %v858 = vpop.f32.mrf.mxu0
        %v859 = vadd.f32 0.0, %v858
        %860 = vdwg.mxu0
        %v861 = vmul.f32 %v859, %v803
        %v862 = vadd.f32 %v831, %v861
        %v863 = vld [vmem:[%s6 + $0x8] sm:$0xff]
        %v865 = vsel %vm655, %v862, 0
        %867 = vmatpush.msra.mxu0 0.0
        %868 = vmatpush.msra.mxu0 0.0
        %869 = vmatpush.msra.mxu0 0.0
        %870 = vmatpush.msra.mxu0 0.0
        %871 = vmatpush.msra.mxu0 0.0
        %872 = vmatpush.msra.mxu0 0.0
        %873 = vmatpush.msra.mxu0 0.0
        %874 = vmatpush.msra.mxu0 0.0
        %875 = vmatpush.msra.mxu0 0.0
        %876 = vmatpush.msra.mxu0 0.0
        %877 = vmatpush.msra.mxu0 0.0
        %878 = vmatpush.msra.mxu0 0.0
        %879 = vmatpush.msra.mxu0 0.0
        %880 = vmatpush.msra.mxu0 0.0
        %881 = vmatpush.msra.mxu0 0.0
        %882 = vmatpush.msra.mxu0 %v863
        %883 = vmatmul.f32.gmra.mxu0 %v865
        %v884 = vpop.f32.mrf.mxu0
        %v885 = vadd.f32 0.0, %v884
        %886 = vdwg.mxu0
        %v888 = vsel %vm655, %v751, 0
        %890 = vmatpush.msra.mxu0 0.0
        %891 = vmatpush.msra.mxu0 0.0
        %892 = vmatpush.msra.mxu0 0.0
        %893 = vmatpush.msra.mxu0 0.0
        %894 = vmatpush.msra.mxu0 0.0
        %895 = vmatpush.msra.mxu0 0.0
        %896 = vmatpush.msra.mxu0 0.0
        %897 = vmatpush.msra.mxu0 0.0
        %898 = vmatpush.msra.mxu0 0.0
        %899 = vmatpush.msra.mxu0 0.0
        %900 = vmatpush.msra.mxu0 0.0
        %901 = vmatpush.msra.mxu0 0.0
        %902 = vmatpush.msra.mxu0 0.0
        %903 = vmatpush.msra.mxu0 0.0
        %904 = vmatpush.msra.mxu0 0.0
        %905 = vmatpush.msra.mxu0 %v752
        %906 = vmatmul.f32.gmra.mxu0 %v888
        %v907 = vpop.f32.mrf.mxu0
        %v908 = vadd.f32 %v885, %v907
        %909 = vdwg.mxu0
        %910 = vrot.lane.b32.xlu0 %v604, 112
        %v911 = vpop.permute.xlu0 %910
        %912 = vrot.lane.b32.xlu0 %v628, 112
        %v913 = vpop.permute.xlu0 %912
        %v914 = vsel %vm655, %v911, 0
        %v916 = vsel %vm655, %v913, 0
        %918 = vmatpush.xpose.msra.mxu0 0.0
        %919 = vmatpush.xpose.msra.mxu0 0.0
        %920 = vmatpush.xpose.msra.mxu0 0.0
        %921 = vmatpush.xpose.msra.mxu0 0.0
        %922 = vmatpush.xpose.msra.mxu0 0.0
        %923 = vmatpush.xpose.msra.mxu0 0.0
        %924 = vmatpush.xpose.msra.mxu0 0.0
        %925 = vmatpush.xpose.msra.mxu0 0.0
        %926 = vmatpush.xpose.msra.mxu0 0.0
        %927 = vmatpush.xpose.msra.mxu0 0.0
        %928 = vmatpush.xpose.msra.mxu0 0.0
        %929 = vmatpush.xpose.msra.mxu0 0.0
        %930 = vmatpush.xpose.msra.mxu0 0.0
        %931 = vmatpush.xpose.msra.mxu0 0.0
        %932 = vmatpush.xpose.msra.mxu0 0.0
        %933 = vmatpush.xpose.msra.mxu0 %v916
        %934 = vmatmul.f32.gmra.mxu0 %v914
        %v935 = vpop.f32.mrf.mxu0
        %v936 = vadd.f32 0.0, %v935
        %937 = vdwg.mxu0
        %v938 = vsel %vm655, %v936, -inf
        %939 = vmax.xlane.f32.xlu0 %v938
        %v940 = vpop.xlane.xlu0 %939
        %v941 = vsub.f32 %v936, %v940
        %v942 = vmul.f32 %v941, 1.442695
        %v943 = vpow.pop %v942
        %v944 = vsel %vm655, %v943, 0.0
        %945 = vadd.xlane.f32.xlu0 %v944
        %v946 = vpop.xlane.xlu0 %945
        %v947 = vrcp.pop %v946
        %v948 = vmul.f32 %v946, %v947
        %v949 = vsub.f32 1.0, %v948
        %v950 = vmul.f32 %v947, %v949
        %v951 = vadd.f32 %v947, %v950
        %vm952 = vweird.f32 %v946
        %vm953 = vweird.f32 %v947
        %vm954 = vmor %vm952, %vm953
        %v955 = vsel %vm954, %v947, %v951
        %v956 = vand.u32 2147483647, %v946
        %vm957 = vcmp.eq.f32.partialorder %v956, 8.507059e+37
        %v958 = vand.u32 %v946, 2147483648
        %v959 = vor.u32 1.1754944e-38, %v958
        %v960 = vsel %vm957, %v959, %v955
        %961 = vrot.lane.b32.xlu0 %v652, 112
        %v962 = vpop.permute.xlu0 %961
        %v965 = vsel %vm655, %v943, 0
        %967 = vmatpush.msra.mxu0 0.0
        %968 = vmatpush.msra.mxu0 0.0
        %969 = vmatpush.msra.mxu0 0.0
        %970 = vmatpush.msra.mxu0 0.0
        %971 = vmatpush.msra.mxu0 0.0
        %972 = vmatpush.msra.mxu0 0.0
        %973 = vmatpush.msra.mxu0 0.0
        %974 = vmatpush.msra.mxu0 0.0
        %975 = vmatpush.msra.mxu0 0.0
        %976 = vmatpush.msra.mxu0 0.0
        %977 = vmatpush.msra.mxu0 0.0
        %978 = vmatpush.msra.mxu0 0.0
        %979 = vmatpush.msra.mxu0 0.0
        %980 = vmatpush.msra.mxu0 0.0
        %981 = vmatpush.msra.mxu0 0.0
        %982 = vmatpush.msra.mxu0 %v962
        %983 = vmatmul.f32.gmra.mxu0 %v965
        %v984 = vpop.f32.mrf.mxu0
        %v985 = vadd.f32 0.0, %v984
        %986 = vdwg.mxu0
        %v987 = vmul.f32 %v985, %v960
        %989 = vrot.lane.b32.xlu0 %v987, 16
        %v990 = vpop.permute.xlu0 %989
        %v992 = vsub.f32 %v652, %v990
        %994 = vrot.lane.b32.xlu0 %v992, 112
        %v995 = vpop.permute.xlu0 %994
        %997 = vmatpush.msra.mxu0 0.0
        %998 = vmatpush.msra.mxu0 0.0
        %999 = vmatpush.msra.mxu0 0.0
        %1000 = vmatpush.msra.mxu0 0.0
        %1001 = vmatpush.msra.mxu0 0.0
        %1002 = vmatpush.msra.mxu0 0.0
        %1003 = vmatpush.msra.mxu0 0.0
        %1004 = vmatpush.msra.mxu0 0.0
        %1005 = vmatpush.msra.mxu0 0.0
        %1006 = vmatpush.msra.mxu0 0.0
        %1007 = vmatpush.msra.mxu0 0.0
        %1008 = vmatpush.msra.mxu0 0.0
        %1009 = vmatpush.msra.mxu0 0.0
        %1010 = vmatpush.msra.mxu0 0.0
        %1011 = vmatpush.msra.mxu0 0.0
        %1012 = vmatpush.msra.mxu0 %v995
        %1013 = vmatmul.f32.gmra.mxu0 %v965
        %v1014 = vpop.f32.mrf.mxu0
        %v1015 = vadd.f32 0.0, %v1014
        %1016 = vdwg.mxu0
        %v1017 = vmul.f32 %v1015, %v960
        %v1018 = vadd.f32 %v987, %v1017
        %v1019 = vld [vmem:[%s6 + $0x10] sm:$0xff]
        %v1021 = vsel %vm655, %v1018, 0
        %1023 = vmatpush.msra.mxu0 0.0
        %1024 = vmatpush.msra.mxu0 0.0
        %1025 = vmatpush.msra.mxu0 0.0
        %1026 = vmatpush.msra.mxu0 0.0
        %1027 = vmatpush.msra.mxu0 0.0
        %1028 = vmatpush.msra.mxu0 0.0
        %1029 = vmatpush.msra.mxu0 0.0
        %1030 = vmatpush.msra.mxu0 0.0
        %1031 = vmatpush.msra.mxu0 0.0
        %1032 = vmatpush.msra.mxu0 0.0
        %1033 = vmatpush.msra.mxu0 0.0
        %1034 = vmatpush.msra.mxu0 0.0
        %1035 = vmatpush.msra.mxu0 0.0
        %1036 = vmatpush.msra.mxu0 0.0
        %1037 = vmatpush.msra.mxu0 0.0
        %1038 = vmatpush.msra.mxu0 %v1019
        %1039 = vmatmul.f32.gmra.mxu0 %v1021
        %v1040 = vpop.f32.mrf.mxu0
        %v1041 = vadd.f32 0.0, %v1040
        %1042 = vdwg.mxu0
        %v1043 = vadd.f32 %v908, %v1041
        %1044 = vrot.lane.b32.xlu0 %v604, 104
        %v1045 = vpop.permute.xlu0 %1044
        %1046 = vrot.lane.b32.xlu0 %v628, 104
        %v1047 = vpop.permute.xlu0 %1046
        %v1048 = vsel %vm655, %v1045, 0
        %v1050 = vsel %vm655, %v1047, 0
        %1052 = vmatpush.xpose.msra.mxu0 0.0
        %1053 = vmatpush.xpose.msra.mxu0 0.0
        %1054 = vmatpush.xpose.msra.mxu0 0.0
        %1055 = vmatpush.xpose.msra.mxu0 0.0
        %1056 = vmatpush.xpose.msra.mxu0 0.0
        %1057 = vmatpush.xpose.msra.mxu0 0.0
        %1058 = vmatpush.xpose.msra.mxu0 0.0
        %1059 = vmatpush.xpose.msra.mxu0 0.0
        %1060 = vmatpush.xpose.msra.mxu0 0.0
        %1061 = vmatpush.xpose.msra.mxu0 0.0
        %1062 = vmatpush.xpose.msra.mxu0 0.0
        %1063 = vmatpush.xpose.msra.mxu0 0.0
        %1064 = vmatpush.xpose.msra.mxu0 0.0
        %1065 = vmatpush.xpose.msra.mxu0 0.0
        %1066 = vmatpush.xpose.msra.mxu0 0.0
        %1067 = vmatpush.xpose.msra.mxu0 %v1050
        %1068 = vmatmul.f32.gmra.mxu0 %v1048
        %v1069 = vpop.f32.mrf.mxu0
        %v1070 = vadd.f32 0.0, %v1069
        %1071 = vdwg.mxu0
        %v1072 = vsel %vm655, %v1070, -inf
        %1073 = vmax.xlane.f32.xlu0 %v1072
        %v1074 = vpop.xlane.xlu0 %1073
        %v1075 = vsub.f32 %v1070, %v1074
        %v1076 = vmul.f32 %v1075, 1.442695
        %v1077 = vpow.pop %v1076
        %v1078 = vsel %vm655, %v1077, 0.0
        %1079 = vadd.xlane.f32.xlu0 %v1078
        %v1080 = vpop.xlane.xlu0 %1079
        %v1081 = vrcp.pop %v1080
        %v1082 = vmul.f32 %v1080, %v1081
        %v1083 = vsub.f32 1.0, %v1082
        %v1084 = vmul.f32 %v1081, %v1083
        %v1085 = vadd.f32 %v1081, %v1084
        %vm1086 = vweird.f32 %v1080
        %vm1087 = vweird.f32 %v1081
        %vm1088 = vmor %vm1086, %vm1087
        %v1089 = vsel %vm1088, %v1081, %v1085
        %v1090 = vand.u32 2147483647, %v1080
        %vm1091 = vcmp.eq.f32.partialorder %v1090, 8.507059e+37
        %v1092 = vand.u32 %v1080, 2147483648
        %v1093 = vor.u32 1.1754944e-38, %v1092
        %v1094 = vsel %vm1091, %v1093, %v1089
        %1095 = vrot.lane.b32.xlu0 %v652, 104
        %v1096 = vpop.permute.xlu0 %1095
        %v1099 = vsel %vm655, %v1077, 0
        %1101 = vmatpush.msra.mxu0 0.0
        %1102 = vmatpush.msra.mxu0 0.0
        %1103 = vmatpush.msra.mxu0 0.0
        %1104 = vmatpush.msra.mxu0 0.0
        %1105 = vmatpush.msra.mxu0 0.0
        %1106 = vmatpush.msra.mxu0 0.0
        %1107 = vmatpush.msra.mxu0 0.0
        %1108 = vmatpush.msra.mxu0 0.0
        %1109 = vmatpush.msra.mxu0 0.0
        %1110 = vmatpush.msra.mxu0 0.0
        %1111 = vmatpush.msra.mxu0 0.0
        %1112 = vmatpush.msra.mxu0 0.0
        %1113 = vmatpush.msra.mxu0 0.0
        %1114 = vmatpush.msra.mxu0 0.0
        %1115 = vmatpush.msra.mxu0 0.0
        %1116 = vmatpush.msra.mxu0 %v1096
        %1117 = vmatmul.f32.gmra.mxu0 %v1099
        %v1118 = vpop.f32.mrf.mxu0
        %v1119 = vadd.f32 0.0, %v1118
        %1120 = vdwg.mxu0
        %v1121 = vmul.f32 %v1119, %v1094
        %1123 = vrot.lane.b32.xlu0 %v1121, 24
        %v1124 = vpop.permute.xlu0 %1123
        %v1126 = vsub.f32 %v652, %v1124
        %1128 = vrot.lane.b32.xlu0 %v1126, 104
        %v1129 = vpop.permute.xlu0 %1128
        %1131 = vmatpush.msra.mxu0 0.0
        %1132 = vmatpush.msra.mxu0 0.0
        %1133 = vmatpush.msra.mxu0 0.0
        %1134 = vmatpush.msra.mxu0 0.0
        %1135 = vmatpush.msra.mxu0 0.0
        %1136 = vmatpush.msra.mxu0 0.0
        %1137 = vmatpush.msra.mxu0 0.0
        %1138 = vmatpush.msra.mxu0 0.0
        %1139 = vmatpush.msra.mxu0 0.0
        %1140 = vmatpush.msra.mxu0 0.0
        %1141 = vmatpush.msra.mxu0 0.0
        %1142 = vmatpush.msra.mxu0 0.0
        %1143 = vmatpush.msra.mxu0 0.0
        %1144 = vmatpush.msra.mxu0 0.0
        %1145 = vmatpush.msra.mxu0 0.0
        %1146 = vmatpush.msra.mxu0 %v1129
        %1147 = vmatmul.f32.gmra.mxu0 %v1099
        %v1148 = vpop.f32.mrf.mxu0
        %v1149 = vadd.f32 0.0, %v1148
        %1150 = vdwg.mxu0
        %v1151 = vmul.f32 %v1149, %v1094
        %v1152 = vadd.f32 %v1121, %v1151
        %v1153 = vld [vmem:[%s6 + $0x18] sm:$0xff]
        %v1155 = vsel %vm655, %v1152, 0
        %1157 = vmatpush.msra.mxu0 0.0
        %1158 = vmatpush.msra.mxu0 0.0
        %1159 = vmatpush.msra.mxu0 0.0
        %1160 = vmatpush.msra.mxu0 0.0
        %1161 = vmatpush.msra.mxu0 0.0
        %1162 = vmatpush.msra.mxu0 0.0
        %1163 = vmatpush.msra.mxu0 0.0
        %1164 = vmatpush.msra.mxu0 0.0
        %1165 = vmatpush.msra.mxu0 0.0
        %1166 = vmatpush.msra.mxu0 0.0
        %1167 = vmatpush.msra.mxu0 0.0
        %1168 = vmatpush.msra.mxu0 0.0
        %1169 = vmatpush.msra.mxu0 0.0
        %1170 = vmatpush.msra.mxu0 0.0
        %1171 = vmatpush.msra.mxu0 0.0
        %1172 = vmatpush.msra.mxu0 %v1153
        %1173 = vmatmul.f32.gmra.mxu0 %v1155
        %v1174 = vpop.f32.mrf.mxu0
        %v1175 = vadd.f32 0.0, %v1174
        %1176 = vdwg.mxu0
        %v1177 = vadd.f32 %v1043, %v1175
        %v1178 = vadd.f32 %v538, %v1177
        %v1179 = vld [vmem:[%s7] sm:$0x1]
        %v1181 = vperm.slane %v1179, 0
        %v1183 = vadd.f32 %v1178, %v1181
        %v1184 = vld [vmem:[%s8] sm:$0x1]
        %v1185 = vld [vmem:[%s9] sm:$0x1]
        %v1186 = vsel %vm541, %v1183, 0.0
        %1187 = vadd.xlane.f32.xlu0 %v1186
        %v1188 = vpop.xlane.xlu0 %1187
        %v1189 = vmul.f32 %v1188, %v551
        %v1190 = vsub.f32 %v1183, %v1189
        %v1191 = vmul.f32 %v1190, %v1190
        %v1192 = vsel %vm541, %v1191, 0.0
        %1193 = vadd.xlane.f32.xlu0 %v1192
        %v1194 = vpop.xlane.xlu0 %1193
        %v1195 = vmul.f32 %v1194, %v551
        %v1196 = vadd.f32 %v1195, 1e-05
        %v1197 = vrsqrt.pop %v1196
        %v1198 = vmul.f32 %v1197, %v1196
        %v1199 = vmul.f32 %v1198, %v1197
        %v1200 = vmul.f32 0.5, %v1199
        %v1201 = vsub.f32 1.5, %v1200
        %v1202 = vmul.f32 %v1197, %v1201
        %vm1203 = vweird.f32 %v1196
        %vm1204 = vweird.f32 %v1197
        %vm1205 = vmor %vm1203, %vm1204
        %v1206 = vsel %vm1205, %v1197, %v1202
        %v1207 = vmul.f32 %v1190, %v1206
        %v1209 = vperm.slane %v1184, 0
        %v1211 = vmul.f32 %v1207, %v1209
        %v1213 = vperm.slane %v1185, 0
        %v1215 = vadd.f32 %v1211, %v1213
        %v1216 = vld [vmem:[%s10] sm:$0xff]
        %v1217 = vld [vmem:[%s10 + $0x8] sm:$0xff]
        %v1218 = vld [vmem:[%s10 + $0x10] sm:$0xff]
        %v1219 = vld [vmem:[%s10 + $0x18] sm:$0xff]
        %v1220 = vld [vmem:[%s11] sm:$0x1]
        %v1222 = vperm.slane %v1220, 0
        %v1225 = vsel %vm541, %v1215, 0
        %1227 = vmatpush.msra.mxu0 0.0
        %1228 = vmatpush.msra.mxu0 0.0
        %1229 = vmatpush.msra.mxu0 0.0
        %1230 = vmatpush.msra.mxu0 0.0
        %1231 = vmatpush.msra.mxu0 0.0
        %1232 = vmatpush.msra.mxu0 0.0
        %1233 = vmatpush.msra.mxu0 0.0
        %1234 = vmatpush.msra.mxu0 0.0
        %1235 = vmatpush.msra.mxu0 0.0
        %1236 = vmatpush.msra.mxu0 0.0
        %1237 = vmatpush.msra.mxu0 0.0
        %1238 = vmatpush.msra.mxu0 0.0
        %1239 = vmatpush.msra.mxu0 %v1219
        %1240 = vmatpush.msra.mxu0 %v1218
        %1241 = vmatpush.msra.mxu0 %v1217
        %1242 = vmatpush.msra.mxu0 %v1216
        %1243 = vmatmul.f32.gmra.mxu0 %v1225
        %v1244 = vpop.f32.mrf.mxu0
        %v1245 = vadd.f32 %v1222, %v1244
        %1246 = vdwg.mxu0
        %v1247 = vmul.f32 %v1245, 0.5
        %v1248 = vmul.f32 %v1245, 0.70710677
        %v1249 = vmul.f32 %v1248, %v1248
        %v1250 = vmin.f32 16.0, %v1249
        %v1251 = vmul.f32 %v1250, 2.1237322e-06
        %v1252 = vadd.f32 %v1251, 0.00028619796
        %v1253 = vmul.f32 %v1250, %v1252
        %v1254 = vadd.f32 %v1253, 0.0036580483
        %v1255 = vmul.f32 %v1250, %v1254
        %v1256 = vadd.f32 %v1255, 0.05243302
        %v1257 = vmul.f32 %v1250, %v1256
        %v1258 = vadd.f32 %v1257, 0.18741608
        %v1259 = vmul.f32 %v1250, %v1258
        %v1260 = vadd.f32 %v1259, 1.1283791
        %v1261 = vmul.f32 %v1248, %v1260
        %v1262 = vmul.f32 %v1250, 3.8918573e-05
        %v1263 = vadd.f32 %v1262, 0.001143296
        %v1264 = vmul.f32 %v1250, %v1263
        %v1265 = vadd.f32 %v1264, 0.014752088
        %v1266 = vmul.f32 %v1250, %v1265
        %v1267 = vadd.f32 %v1266, 0.112945676
        %v1268 = vmul.f32 %v1250, %v1267
        %v1269 = vadd.f32 %v1268, 0.4994258
        %v1270 = vmul.f32 %v1250, %v1269
        %v1271 = vadd.f32 %v1270, 1.0
        %v1272 = vrcp.pop %v1271
        %v1273 = vmul.f32 %v1271, %v1272
        %v1274 = vsub.f32 1.0, %v1273
        %v1275 = vmul.f32 %v1272, %v1274
        %v1276 = vadd.f32 %v1272, %v1275
        %vm1277 = vweird.f32 %v1271
        %vm1278 = vweird.f32 %v1272
        %vm1279 = vmor %vm1277, %vm1278
        %v1280 = vsel %vm1279, %v1272, %v1276
        %v1281 = vand.u32 2147483647, %v1271
        %vm1282 = vcmp.eq.f32.partialorder %v1281, 8.507059e+37
        %v1283 = vand.u32 %v1271, 2147483648
        %v1284 = vor.u32 1.1754944e-38, %v1283
        %v1285 = vsel %vm1282, %v1284, %v1280
        %v1286 = vmul.f32 %v1261, %v1285
        %v1287 = vmin.f32 %v1286, 1.0
        %v1288 = vmax.f32 %v1287, -1.0
        %v1289 = vadd.f32 %v1288, 1.0
        %v1290 = vmul.f32 %v1247, %v1289
        %v1291 = vld [vmem:[%s12] sm:$0xff]
        %v1292 = vld [vmem:[%s12 + $0x8] sm:$0xff]
        %v1293 = vld [vmem:[%s12 + $0x10] sm:$0xff]
        %v1294 = vld [vmem:[%s12 + $0x18] sm:$0xff]
        %v1295 = vld [vmem:[%s12 + $0x20] sm:$0xff]
        %v1296 = vld [vmem:[%s12 + $0x28] sm:$0xff]
        %v1297 = vld [vmem:[%s12 + $0x30] sm:$0xff]
        %v1298 = vld [vmem:[%s12 + $0x38] sm:$0xff]
        %v1299 = vld [vmem:[%s12 + $0x40] sm:$0xff]
        %v1300 = vld [vmem:[%s12 + $0x48] sm:$0xff]
        %v1301 = vld [vmem:[%s12 + $0x50] sm:$0xff]
        %v1302 = vld [vmem:[%s12 + $0x58] sm:$0xff]
        %v1303 = vld [vmem:[%s12 + $0x60] sm:$0xff]
        %v1304 = vld [vmem:[%s12 + $0x68] sm:$0xff]
        %v1305 = vld [vmem:[%s12 + $0x70] sm:$0xff]
        %v1306 = vld [vmem:[%s12 + $0x78] sm:$0xff]
        %v1307 = vld [vmem:[%s13] sm:$0x1]
        %v1309 = vperm.slane %v1307, 0
        %1311 = vmatpush.msra.mxu0 %v1306
        %1312 = vmatpush.msra.mxu0 %v1305
        %1313 = vmatpush.msra.mxu0 %v1304
        %1314 = vmatpush.msra.mxu0 %v1303
        %1315 = vmatpush.msra.mxu0 %v1302
        %1316 = vmatpush.msra.mxu0 %v1301
        %1317 = vmatpush.msra.mxu0 %v1300
        %1318 = vmatpush.msra.mxu0 %v1299
        %1319 = vmatpush.msra.mxu0 %v1298
        %1320 = vmatpush.msra.mxu0 %v1297
        %1321 = vmatpush.msra.mxu0 %v1296
        %1322 = vmatpush.msra.mxu0 %v1295
        %1323 = vmatpush.msra.mxu0 %v1294
        %1324 = vmatpush.msra.mxu0 %v1293
        %1325 = vmatpush.msra.mxu0 %v1292
        %1326 = vmatpush.msra.mxu0 %v1291
        %1327 = vmatmul.f32.gmra.mxu0 %v1290
        %v1328 = vpop.f32.mrf.mxu0
        %v1329 = vadd.f32 %v1309, %v1328
        %1330 = vdwg.mxu0
        %v1331 = vadd.f32 %v1183, %v1329
        %1332 = vst.msk [vmem:[%s530] sm:$0xff] %vm541, %v1331
        %s1333 = sand.u32 %s344, 1
        %s1334 = scalar_lea.sflag [#allocation4], %s1333
        %s1335 = sand.u32 %s344, 1
        %s1336 = smul.addr %s1335, 8
        %s1337 = scalar_lea.vmem [#allocation7], %s1336
        %s1338 = sand.u32 %s370, 1
        %s1339 = scalar_lea.sflag [#allocation9], %s1338
        %s1340 = sand.u32 %s370, 1
        %s1341 = smul.addr %s1340, 8
        %s1342 = scalar_lea.vmem [#allocation8], %s1341
        // Predicated region
        $region85: #{tpu_custom_call.1} parent=75 // pred_check
          %p1343 = pneg %p354
        $region86: #{tpu_custom_call.1} parent=75 // pred_check_branch
          %1345 = sbr.rel (%p1343) target = $region88
        $region87: #{tpu_custom_call.1} parent=75 // pred_region
          %1347 = vsyncadd %s1334, 0
          %s1348 = smul.addr %s37, 8
          %s1349 = scalar_lea.hbm %s14, %s1348
          %s1351 = sshll.u32 %s1337, 4
          %s1352 = int_to_ptr.vmem [resolvable:$true] %s1351
          %s1353 = sshll.u32 %s1349, 4
          %s1354 = int_to_ptr.hbm [resolvable:$true] %s1353
          %1356 = dma.vmem_to_hbm [thread:$0]  %s1352, 128, %s1354, %s1334
        $region88: #{tpu_custom_call.1} parent=75 // pred_fallthru
          _
        // Predicated region
        $region89: #{tpu_custom_call.1} parent=75 // pred_check
          %p1357 = pneg %p380
        $region90: #{tpu_custom_call.1} parent=75 // pred_check_branch
          %1359 = sbr.rel (%p1357) target = $region92
        $region91: #{tpu_custom_call.1} parent=75 // pred_region
          %1361 = vsyncadd %s1339, 0
          %s1362 = smul.addr %s37, 8
          %s1363 = scalar_lea.hbm %s15, %s1362
          %s1365 = sshll.u32 %s1342, 4
          %s1366 = int_to_ptr.vmem [resolvable:$true] %s1365
          %s1367 = sshll.u32 %s1363, 4
          %s1368 = int_to_ptr.hbm [resolvable:$true] %s1367
          %1370 = dma.vmem_to_hbm [thread:$0]  %s1366, 128, %s1368, %s1339
        $region92: #{tpu_custom_call.1} parent=75 // pred_fallthru
          _
      $region76: #{tpu_custom_call.1} parent=5 // pred_fallthru
        _
      %p1371 = scmp.le.s32.totalorder 2, %s32
      // Predicated region
      $region93: #{tpu_custom_call.1} parent=5 // pred_check
        %p1372 = pneg %p1371
      $region94: #{tpu_custom_call.1} parent=5 // pred_check_branch
        %1374 = sbr.rel (%p1372) target = $region96
      $region95: #{tpu_custom_call.1} parent=5 // pred_region
        %s1375 = ssub.s32 %s32, 2
        // Predicated region
        $region97: #{tpu_custom_call.1} parent=95 // pred_check
          %p1376 = pneg %p360
        $region98: #{tpu_custom_call.1} parent=95 // pred_check_branch
          %1378 = sbr.rel (%p1376) target = $region100
        $region99: #{tpu_custom_call.1} parent=95 // pred_region
          %s1379 = sand.u32 %s345, 1
          %s1380 = scalar_lea.sflag [#allocation4], %s1379
          %s1381 = sand.u32 %s345, 1
          %s1382 = smul.addr %s1381, 8
          %s1383 = scalar_lea.vmem [#allocation7], %s1382
          %1385 = dma.done %s1380, 128
        $region100: #{tpu_custom_call.1} parent=95 // pred_fallthru
          _
        // Predicated region
        $region101: #{tpu_custom_call.1} parent=95 // pred_check
          %p1386 = pneg %p386
        $region102: #{tpu_custom_call.1} parent=95 // pred_check_branch
          %1388 = sbr.rel (%p1386) target = $region104
        $region103: #{tpu_custom_call.1} parent=95 // pred_region
          %s1389 = sand.u32 %s371, 1
          %s1390 = scalar_lea.sflag [#allocation9], %s1389
          %s1391 = sand.u32 %s371, 1
          %s1392 = smul.addr %s1391, 8
          %s1393 = scalar_lea.vmem [#allocation8], %s1392
          %1395 = dma.done %s1390, 128
        $region104: #{tpu_custom_call.1} parent=95 // pred_fallthru
          _
      $region96: #{tpu_custom_call.1} parent=5 // pred_fallthru
        _
    $region6: #{tpu_custom_call.1} parent=1 // loop_footer
      %s36 = sadd.s32 1, %s32
    $region7: #{tpu_custom_call.1} parent=1 // loop_footer_branch
      %31 = sbr.rel target = $region3
    $region8: #{tpu_custom_call.1} parent=1 // loop_exit
      _
    %1396 = vsyncpa [#allocation3], 1
    %s1397 = scalar_lea.sflag [#allocation3], 1
    %1398 = vsyncpa %s1397, 1
    %1399 = vsyncpa [#allocation6], 1
    %1400 = vsyncpa [#allocation4], 1
    %s1401 = scalar_lea.sflag [#allocation4], 1
    %1402 = vsyncpa %s1401, 1
    %1403 = vsyncpa [#allocation9], 1
    %s1404 = scalar_lea.sflag [#allocation9], 1
    %1405 = vsyncpa %s1404, 1

</llo_original>
